<compile_context>
chip_gen: v5e
topology: v5e:2x2
jax: 0.10.0
libtpu: 0.0.40
codegen_flags: <defaults>
</compile_context>

<pallas_src>
import jax
import jax.numpy as jnp
import numpy as np
from jax.experimental import pallas as pl
from jax.experimental.pallas import tpu as pltpu

KSIZE = 7
PAD = (KSIZE - 1) // 2          # 3
NTAP = 2 * KSIZE * KSIZE        # 98


# --------------------------------------------------------------------------
# Shared conv + sigmoid helper (runs on flat, zero-padded pooled maps).
# --------------------------------------------------------------------------
def _conv_sigmoid_flat(avg_f, max_f, w_ref, col, padf_ref, H, W):
    """sigmoid(conv7x7([avg; max]) + bias) on flat (rows, H*W) pooled maps.

    padf_ref: VMEM f32 (2, rows, HW + 2*OFF) scratch, OFF = PAD*W + PAD.  The
    scratch is zeroed here, then only the interior [OFF, OFF+HW) is written,
    so tap (kh, kw) for flat output position p is the contiguous lane slice
    starting at kh*W + kw.

    Flat-padding invariant (do NOT change OFF without re-checking): vertically
    out-of-range taps land in the zero borders EXCEPT taps that are exactly
    one row out of range AND horizontally out of range, which wrap into the
    interior of an adjacent row; those are exactly the positions zeroed by the
    per-kw column masks below, so the wrap never leaks into the output.
    Requires W >= 3 (asserted in the wrapper).
    """
    HW = H * W
    OFF = PAD * W + PAD
    rows = avg_f.shape[0]

    # Zero borders + interior, then overwrite the interior with the pooled
    # maps (small scratch, and per-step zeroing is safe under megacore grid
    # splitting, unlike a program_id(0)==0 guard).
    padf_ref[...] = jnp.zeros_like(padf_ref)
    padf_ref[0, :, OFF:OFF + HW] = avg_f
    padf_ref[1, :, OFF:OFF + HW] = max_f

    # Scalar conv weights / bias out of SMEM, hoisted out of the tap loops.
    wvals = [w_ref[i] for i in range(NTAP)]
    bias = w_ref[NTAP]

    acc = jnp.full((rows, HW), bias, dtype=jnp.float32)
    for kw in range(KSIZE):
        d = kw - PAD
        part = None
        for c in range(2):
            for kh in range(KSIZE):
                s = kh * W + kw            # == OFF + (kh-PAD)*W + (kw-PAD)
                tap = padf_ref[c, :, s:s + HW]                     # (rows, HW)
                term = wvals[c * KSIZE * KSIZE + kh * KSIZE + kw] * tap
                part = term if part is None else part + term
        if d < 0:                          # taps reading left of the row
            part = jnp.where(col >= -d, part, 0.0)
        elif d > 0:                        # taps reading right of the row
            part = jnp.where(col < (W - d), part, 0.0)
        acc = acc + part
    return jax.nn.sigmoid(acc)             # (rows, HW) f32


# --------------------------------------------------------------------------
# Kernels
# --------------------------------------------------------------------------
def _make_fused_kernel(C, H, W):
    inv_c = 1.0 / C

    def kernel(w_ref, col_ref, x_ref, o_ref, padf_ref):
        # w_ref   : SMEM f32[99]          flattened conv weight, last = bias
        # col_ref : VMEM i32[1, HW]       column-within-row of each position
        # x_ref   : VMEM (bblk, C, HW)    input block
        # o_ref   : VMEM (bblk, C, HW)    output block
        # padf_ref: VMEM f32 (2, bblk, HW + 2*OFF)

        # Channel pooling, vectorized over the whole block; f32 accumulate is
        # fused into the reduction (no full-size f32 copy of x stays live).
        avg_f = jnp.sum(x_ref[...], axis=1, dtype=jnp.float32) * inv_c  # (bblk, HW)
        max_f = jnp.max(x_ref[...], axis=1).astype(jnp.float32)         # (bblk, HW)

        attn = _conv_sigmoid_flat(avg_f, max_f, w_ref, col_ref[...],
                                  padf_ref, H, W)                       # (bblk, HW)

        # Re-read x from the VMEM block, multiply in f32, cast at the store.
        o_ref[...] = (x_ref[...].astype(jnp.float32)
                      * attn[:, None, :]).astype(o_ref.dtype)

    return kernel


def _make_pool_conv_kernel(C, H, W):
    inv_c = 1.0 / C

    def kernel(w_ref, col_ref, x_ref, attn_ref, sum_ref, max_ref, padf_ref):
        # Grid: (batch blocks [parallel], C chunks [arbitrary]).
        ci = pl.program_id(1)

        @pl.when(ci == 0)
        def _():
            sum_ref[...] = jnp.zeros_like(sum_ref)
            max_ref[...] = jnp.full_like(max_ref, -jnp.inf)

        sum_ref[...] += jnp.sum(x_ref[...], axis=1, dtype=jnp.float32)
        max_ref[...] = jnp.maximum(
            max_ref[...], jnp.max(x_ref[...], axis=1).astype(jnp.float32))

        @pl.when(ci == pl.num_programs(1) - 1)
        def _():
            attn_ref[...] = _conv_sigmoid_flat(
                sum_ref[...] * inv_c, max_ref[...], w_ref, col_ref[...],
                padf_ref, H, W)

    return kernel


def _mul_kernel(x_ref, a_ref, o_ref):
    o_ref[...] = (x_ref[...].astype(jnp.float32)
                  * a_ref[...][:, None, :]).astype(o_ref.dtype)


# --------------------------------------------------------------------------
# Wrapper / tiling policy
# --------------------------------------------------------------------------
def _pick_bblk(B, per_b_bytes, budget):
    """Largest divisor of B whose input block fits the budget while keeping
    >= min(B, 4) grid steps (so two TensorCores each get >= 2 steps and the
    double-buffered DMA actually overlaps compute)."""
    min_steps = min(B, 4)
    bblk = 1
    for cand in range(1, B + 1):
        if B % cand:
            continue
        if cand > 1 and cand * per_b_bytes > budget:
            break
        if (B // cand) >= min_steps:
            bblk = cand
    return bblk


def _vmem_limit(needed_bytes):
    # 1.5x headroom over the estimated footprint, clamped to [32, 64] MiB so
    # it is valid on every generation (v7x physical VMEM is 64 MiB).
    return int(min(64 << 20, max(32 << 20, int(needed_bytes * 1.5))))


def _fused_path(x_flat, w_flat, col, C, H, W, budget):
    B = x_flat.shape[0]
    HW = H * W
    L = HW + 2 * (PAD * W + PAD)
    item = x_flat.dtype.itemsize

    bblk = _pick_bblk(B, C * HW * item, budget)
    block_bytes = bblk * C * HW * item
    needed = 4 * block_bytes + 2 * bblk * L * 4 + 4 * bblk * HW * 4

    return pl.pallas_call(
        _make_fused_kernel(C, H, W),
        out_shape=jax.ShapeDtypeStruct((B, C, HW), x_flat.dtype),
        grid=(B // bblk,),
        in_specs=[
            pl.BlockSpec(memory_space=pltpu.MemorySpace.SMEM),     # conv w + bias
            pl.BlockSpec((1, HW), lambda i: (0, 0)),               # column index
            pl.BlockSpec((bblk, C, HW), lambda i: (i, 0, 0)),      # x block
        ],
        out_specs=pl.BlockSpec((bblk, C, HW), lambda i: (i, 0, 0)),
        scratch_shapes=[pltpu.VMEM((2, bblk, L), jnp.float32)],
        compiler_params=pltpu.CompilerParams(
            dimension_semantics=("parallel",),
            vmem_limit_bytes=_vmem_limit(needed)),
    )(w_flat, col, x_flat)


def _chunked_path(x_flat, w_flat, col, C, H, W, budget):
    """Two-pass path for large C*HW: pass 1 accumulates pooled maps over C
    chunks and computes attn; pass 2 streams the elementwise multiply."""
    B = x_flat.shape[0]
    HW = H * W
    L = HW + 2 * (PAD * W + PAD)
    item = x_flat.dtype.itemsize

    cblk = 1
    for cand in range(2, C + 1):
        if C % cand:
            continue
        if cand * HW * item > budget:
            break
        cblk = cand
    bblk = _pick_bblk(B, cblk * HW * item, budget)
    nb, nc = B // bblk, C // cblk
    block_bytes = bblk * cblk * HW * item

    needed1 = (2 * block_bytes + 2 * bblk * HW * 4
               + 4 * bblk * HW * 4 + 2 * bblk * L * 4 + 4 * bblk * HW * 4)
    attn = pl.pallas_call(
        _make_pool_conv_kernel(C, H, W),
        out_shape=jax.ShapeDtypeStruct((B, HW), jnp.float32),
        grid=(nb, nc),
        in_specs=[
            pl.BlockSpec(memory_space=pltpu.MemorySpace.SMEM),
            pl.BlockSpec((1, HW), lambda i, c: (0, 0)),
            pl.BlockSpec((bblk, cblk, HW), lambda i, c: (i, c, 0)),
        ],
        out_specs=pl.BlockSpec((bblk, HW), lambda i, c: (i, 0)),
        scratch_shapes=[pltpu.VMEM((bblk, HW), jnp.float32),       # sum acc
                        pltpu.VMEM((bblk, HW), jnp.float32),       # max acc
                        pltpu.VMEM((2, bblk, L), jnp.float32)],    # padded maps
        compiler_params=pltpu.CompilerParams(
            dimension_semantics=("parallel", "arbitrary"),
            vmem_limit_bytes=_vmem_limit(needed1)),
    )(w_flat, col, x_flat)

    needed2 = 4 * block_bytes + 2 * bblk * HW * 4
    return pl.pallas_call(
        _mul_kernel,
        out_shape=jax.ShapeDtypeStruct((B, C, HW), x_flat.dtype),
        grid=(nb, nc),
        in_specs=[
            pl.BlockSpec((bblk, cblk, HW), lambda i, c: (i, c, 0)),
            pl.BlockSpec((bblk, HW), lambda i, c: (i, 0)),
        ],
        out_specs=pl.BlockSpec((bblk, cblk, HW), lambda i, c: (i, c, 0)),
        compiler_params=pltpu.CompilerParams(
            dimension_semantics=("parallel", "parallel"),
            vmem_limit_bytes=_vmem_limit(needed2)),
    )(x_flat, attn)


def spatial_attention(x, weight, bias, *, block_budget_bytes=6 << 20):
    """x: (B, C, H, W); weight: (1, 2, 7, 7); bias: (1,). Returns (B, C, H, W)."""
    B, C, H, W = x.shape
    assert W >= 3, "flat zero-pad scheme requires W >= 3"
    HW = H * W

    # Lane-dense layout for the big load/store path (free reshape).
    x_flat = x.reshape(B, C, HW)
    w_flat = jnp.concatenate([weight.reshape(-1), bias.reshape(-1)]).astype(jnp.float32)
    # Column-within-row index of each flat position (tiny VMEM input, used by
    # the per-kw wrap masks; kept as an input to avoid an in-kernel int mod).
    col = (jnp.arange(HW, dtype=jnp.int32) % W).reshape(1, HW)

    if C * HW * x.dtype.itemsize <= block_budget_bytes:
        out_flat = _fused_path(x_flat, w_flat, col, C, H, W, block_budget_bytes)
    else:
        out_flat = _chunked_path(x_flat, w_flat, col, C, H, W, block_budget_bytes)
    return out_flat.reshape(B, C, H, W)


# --------------------------------------------------------------------------
# Reference + self-test
# --------------------------------------------------------------------------
def _reference(x, weight, bias):
    """Pure-JAX reference matching the PyTorch forward."""
    avg_out = jnp.mean(x, axis=1, keepdims=True)
    max_out = jnp.max(x, axis=1, keepdims=True)
    pooled = jnp.concatenate([avg_out, max_out], axis=1)        # (B, 2, H, W)
    conv = jax.lax.conv_general_dilated(
        pooled, weight, window_strides=(1, 1),
        padding=[(PAD, PAD), (PAD, PAD)],
        dimension_numbers=("NCHW", "OIHW", "NCHW"),
    ) + bias.reshape(1, 1, 1, 1)
    return x * jax.nn.sigmoid(conv)


if __name__ == "__main__":
    key = jax.random.PRNGKey(0)
    kx, kw, kb, kx2 = jax.random.split(key, 4)

    # Deterministic Conv2d(2, 1, 7, padding=3) params (PyTorch-style init).
    fan_in = 2 * KSIZE * KSIZE
    bound = 1.0 / np.sqrt(fan_in)
    weight = jax.random.uniform(kw, (1, 2, KSIZE, KSIZE), jnp.float32, -bound, bound)
    bias = jax.random.uniform(kb, (1,), jnp.float32, -bound, bound)

    # Main test: B=2, C=4, 16x16 (fused single-kernel path).
    x = jax.random.normal(kx, (2, 4, 16, 16), dtype=jnp.float32)
    out = jax.block_until_ready(spatial_attention(x, weight, bias))
    ref = jax.block_until_ready(_reference(x, weight, bias))
    assert out.shape == x.shape
    np.testing.assert_allclose(np.asarray(out), np.asarray(ref), rtol=1e-5, atol=1e-5)

    # Batched-conv fused path with bblk > 1.
    x2 = jax.random.normal(kx2, (8, 8, 8, 8), dtype=jnp.float32)
    out2 = jax.block_until_ready(spatial_attention(x2, weight, bias))
    ref2 = jax.block_until_ready(_reference(x2, weight, bias))
    np.testing.assert_allclose(np.asarray(out2), np.asarray(ref2), rtol=1e-5, atol=1e-5)

    # C-chunked two-pass path (forced with a tiny block budget).
    out3 = jax.block_until_ready(
        spatial_attention(x2, weight, bias, block_budget_bytes=1024))
    np.testing.assert_allclose(np.asarray(out3), np.asarray(ref2), rtol=1e-5, atol=1e-5)

    print("KERNEL_OK")
</pallas_src>

<mosaic_0001>
module attributes {stable_mosaic.version = 11 : i64} {
  func.func @kernel(%arg0: i32, %arg1: memref<99xf32, #tpu.memory_space<smem>>, %arg2: memref<1x256xi32, #tpu.memory_space<vmem>>, %arg3: memref<1x4x256xf32, #tpu.memory_space<vmem>>, %arg4: memref<1x4x256xf32, #tpu.memory_space<vmem>>, %arg5: memref<2x1x358xf32, #tpu.memory_space<vmem>>) attributes {dimension_semantics = [#tpu.dimension_semantics<parallel>], iteration_bounds = array<i64: 2>, scalar_prefetch = 0 : i64, scratch_operands = 1 : i64, tpu.core_type = #tpu.core_type<tc>, window_params = [{transform_indices = @transform_0, window_bounds = array<i64: 99>}, {pipeline_mode = #tpu.pipeline_mode<synchronous>, transform_indices = @transform_1, window_bounds = array<i64: 1, 256>}, {transform_indices = @transform_2, window_bounds = array<i64: 1, 4, 256>}, {transform_indices = @transform_3, window_bounds = array<i64: 1, 4, 256>}]} {
    %c0 = arith.constant 0 : index
    %c0_0 = arith.constant 0 : index
    %c0_1 = arith.constant 0 : index
    %0 = vector.load %arg3[%c0, %c0_0, %c0_1] : memref<1x4x256xf32, #tpu.memory_space<vmem>>, vector<1x4x256xf32>
    %cst = arith.constant dense<0.000000e+00> : vector<1x256xf32>
    %1 = vector.multi_reduction <add>, %0, %cst [1] : vector<1x4x256xf32> to vector<1x256xf32>
    %cst_2 = arith.constant 2.500000e-01 : f32
    %2 = vector.broadcast %cst_2 : f32 to vector<1x256xf32>
    %3 = arith.mulf %1, %2 : vector<1x256xf32>
    %c0_3 = arith.constant 0 : index
    %c0_4 = arith.constant 0 : index
    %c0_5 = arith.constant 0 : index
    %4 = vector.load %arg3[%c0_3, %c0_4, %c0_5] : memref<1x4x256xf32, #tpu.memory_space<vmem>>, vector<1x4x256xf32>
    %cst_6 = arith.constant dense<0xFF800000> : vector<1x256xf32>
    %5 = vector.multi_reduction <maximumf>, %4, %cst_6 [1] : vector<1x4x256xf32> to vector<1x256xf32>
    %c0_7 = arith.constant 0 : index
    %c0_8 = arith.constant 0 : index
    %6 = vector.load %arg2[%c0_7, %c0_8] : memref<1x256xi32, #tpu.memory_space<vmem>>, vector<1x256xi32>
    %cst_9 = arith.constant 0.000000e+00 : f32
    %7 = vector.broadcast %cst_9 : f32 to vector<2x1x358xf32>
    %c0_10 = arith.constant 0 : index
    %c0_11 = arith.constant 0 : index
    %c0_12 = arith.constant 0 : index
    %8 = vector.load %arg5[%c0_10, %c0_11, %c0_12] : memref<2x1x358xf32, #tpu.memory_space<vmem>>, vector<2x1x358xf32>
    tpu.vector_store %arg5[%c0_10, %c0_11, %c0_12], %7 {strides = array<i32>} : memref<2x1x358xf32, #tpu.memory_space<vmem>>, vector<2x1x358xf32>,
    %c0_13 = arith.constant 0 : index
    %c0_14 = arith.constant 0 : index
    %c51 = arith.constant 51 : index
    %9 = vector.load %arg5[%c0_13, %c0_14, %c51] : memref<2x1x358xf32, #tpu.memory_space<vmem>>, vector<1x1x256xf32>
    %10 = vector.shape_cast %9 : vector<1x1x256xf32> to vector<1x256xf32>
    %11 = vector.shape_cast %3 : vector<1x256xf32> to vector<1x1x256xf32>
    tpu.vector_store %arg5[%c0_13, %c0_14, %c51], %11 {strides = array<i32>} : memref<2x1x358xf32, #tpu.memory_space<vmem>>, vector<1x1x256xf32>,
    %c1 = arith.constant 1 : index
    %c0_15 = arith.constant 0 : index
    %c51_16 = arith.constant 51 : index
    %12 = vector.load %arg5[%c1, %c0_15, %c51_16] : memref<2x1x358xf32, #tpu.memory_space<vmem>>, vector<1x1x256xf32>
    %13 = vector.shape_cast %12 : vector<1x1x256xf32> to vector<1x256xf32>
    %14 = vector.shape_cast %5 : vector<1x256xf32> to vector<1x1x256xf32>
    tpu.vector_store %arg5[%c1, %c0_15, %c51_16], %14 {strides = array<i32>} : memref<2x1x358xf32, #tpu.memory_space<vmem>>, vector<1x1x256xf32>,
    %c0_17 = arith.constant 0 : index
    %15 = memref.load %arg1[%c0_17] : memref<99xf32, #tpu.memory_space<smem>>
    %c1_18 = arith.constant 1 : index
    %16 = memref.load %arg1[%c1_18] : memref<99xf32, #tpu.memory_space<smem>>
    %c2 = arith.constant 2 : index
    %17 = memref.load %arg1[%c2] : memref<99xf32, #tpu.memory_space<smem>>
    %c3 = arith.constant 3 : index
    %18 = memref.load %arg1[%c3] : memref<99xf32, #tpu.memory_space<smem>>
    %c4 = arith.constant 4 : index
    %19 = memref.load %arg1[%c4] : memref<99xf32, #tpu.memory_space<smem>>
    %c5 = arith.constant 5 : index
    %20 = memref.load %arg1[%c5] : memref<99xf32, #tpu.memory_space<smem>>
    %c6 = arith.constant 6 : index
    %21 = memref.load %arg1[%c6] : memref<99xf32, #tpu.memory_space<smem>>
    %c7 = arith.constant 7 : index
    %22 = memref.load %arg1[%c7] : memref<99xf32, #tpu.memory_space<smem>>
    %c8 = arith.constant 8 : index
    %23 = memref.load %arg1[%c8] : memref<99xf32, #tpu.memory_space<smem>>
    %c9 = arith.constant 9 : index
    %24 = memref.load %arg1[%c9] : memref<99xf32, #tpu.memory_space<smem>>
    %c10 = arith.constant 10 : index
    %25 = memref.load %arg1[%c10] : memref<99xf32, #tpu.memory_space<smem>>
    %c11 = arith.constant 11 : index
    %26 = memref.load %arg1[%c11] : memref<99xf32, #tpu.memory_space<smem>>
    %c12 = arith.constant 12 : index
    %27 = memref.load %arg1[%c12] : memref<99xf32, #tpu.memory_space<smem>>
    %c13 = arith.constant 13 : index
    %28 = memref.load %arg1[%c13] : memref<99xf32, #tpu.memory_space<smem>>
    %c14 = arith.constant 14 : index
    %29 = memref.load %arg1[%c14] : memref<99xf32, #tpu.memory_space<smem>>
    %c15 = arith.constant 15 : index
    %30 = memref.load %arg1[%c15] : memref<99xf32, #tpu.memory_space<smem>>
    %c16 = arith.constant 16 : index
    %31 = memref.load %arg1[%c16] : memref<99xf32, #tpu.memory_space<smem>>
    %c17 = arith.constant 17 : index
    %32 = memref.load %arg1[%c17] : memref<99xf32, #tpu.memory_space<smem>>
    %c18 = arith.constant 18 : index
    %33 = memref.load %arg1[%c18] : memref<99xf32, #tpu.memory_space<smem>>
    %c19 = arith.constant 19 : index
    %34 = memref.load %arg1[%c19] : memref<99xf32, #tpu.memory_space<smem>>
    %c20 = arith.constant 20 : index
    %35 = memref.load %arg1[%c20] : memref<99xf32, #tpu.memory_space<smem>>
    %c21 = arith.constant 21 : index
    %36 = memref.load %arg1[%c21] : memref<99xf32, #tpu.memory_space<smem>>
    %c22 = arith.constant 22 : index
    %37 = memref.load %arg1[%c22] : memref<99xf32, #tpu.memory_space<smem>>
    %c23 = arith.constant 23 : index
    %38 = memref.load %arg1[%c23] : memref<99xf32, #tpu.memory_space<smem>>
    %c24 = arith.constant 24 : index
    %39 = memref.load %arg1[%c24] : memref<99xf32, #tpu.memory_space<smem>>
    %c25 = arith.constant 25 : index
    %40 = memref.load %arg1[%c25] : memref<99xf32, #tpu.memory_space<smem>>
    %c26 = arith.constant 26 : index
    %41 = memref.load %arg1[%c26] : memref<99xf32, #tpu.memory_space<smem>>
    %c27 = arith.constant 27 : index
    %42 = memref.load %arg1[%c27] : memref<99xf32, #tpu.memory_space<smem>>
    %c28 = arith.constant 28 : index
    %43 = memref.load %arg1[%c28] : memref<99xf32, #tpu.memory_space<smem>>
    %c29 = arith.constant 29 : index
    %44 = memref.load %arg1[%c29] : memref<99xf32, #tpu.memory_space<smem>>
    %c30 = arith.constant 30 : index
    %45 = memref.load %arg1[%c30] : memref<99xf32, #tpu.memory_space<smem>>
    %c31 = arith.constant 31 : index
    %46 = memref.load %arg1[%c31] : memref<99xf32, #tpu.memory_space<smem>>
    %c32 = arith.constant 32 : index
    %47 = memref.load %arg1[%c32] : memref<99xf32, #tpu.memory_space<smem>>
    %c33 = arith.constant 33 : index
    %48 = memref.load %arg1[%c33] : memref<99xf32, #tpu.memory_space<smem>>
    %c34 = arith.constant 34 : index
    %49 = memref.load %arg1[%c34] : memref<99xf32, #tpu.memory_space<smem>>
    %c35 = arith.constant 35 : index
    %50 = memref.load %arg1[%c35] : memref<99xf32, #tpu.memory_space<smem>>
    %c36 = arith.constant 36 : index
    %51 = memref.load %arg1[%c36] : memref<99xf32, #tpu.memory_space<smem>>
    %c37 = arith.constant 37 : index
    %52 = memref.load %arg1[%c37] : memref<99xf32, #tpu.memory_space<smem>>
    %c38 = arith.constant 38 : index
    %53 = memref.load %arg1[%c38] : memref<99xf32, #tpu.memory_space<smem>>
    %c39 = arith.constant 39 : index
    %54 = memref.load %arg1[%c39] : memref<99xf32, #tpu.memory_space<smem>>
    %c40 = arith.constant 40 : index
    %55 = memref.load %arg1[%c40] : memref<99xf32, #tpu.memory_space<smem>>
    %c41 = arith.constant 41 : index
    %56 = memref.load %arg1[%c41] : memref<99xf32, #tpu.memory_space<smem>>
    %c42 = arith.constant 42 : index
    %57 = memref.load %arg1[%c42] : memref<99xf32, #tpu.memory_space<smem>>
    %c43 = arith.constant 43 : index
    %58 = memref.load %arg1[%c43] : memref<99xf32, #tpu.memory_space<smem>>
    %c44 = arith.constant 44 : index
    %59 = memref.load %arg1[%c44] : memref<99xf32, #tpu.memory_space<smem>>
    %c45 = arith.constant 45 : index
    %60 = memref.load %arg1[%c45] : memref<99xf32, #tpu.memory_space<smem>>
    %c46 = arith.constant 46 : index
    %61 = memref.load %arg1[%c46] : memref<99xf32, #tpu.memory_space<smem>>
    %c47 = arith.constant 47 : index
    %62 = memref.load %arg1[%c47] : memref<99xf32, #tpu.memory_space<smem>>
    %c48 = arith.constant 48 : index
    %63 = memref.load %arg1[%c48] : memref<99xf32, #tpu.memory_space<smem>>
    %c49 = arith.constant 49 : index
    %64 = memref.load %arg1[%c49] : memref<99xf32, #tpu.memory_space<smem>>
    %c50 = arith.constant 50 : index
    %65 = memref.load %arg1[%c50] : memref<99xf32, #tpu.memory_space<smem>>
    %c51_19 = arith.constant 51 : index
    %66 = memref.load %arg1[%c51_19] : memref<99xf32, #tpu.memory_space<smem>>
    %c52 = arith.constant 52 : index
    %67 = memref.load %arg1[%c52] : memref<99xf32, #tpu.memory_space<smem>>
    %c53 = arith.constant 53 : index
    %68 = memref.load %arg1[%c53] : memref<99xf32, #tpu.memory_space<smem>>
    %c54 = arith.constant 54 : index
    %69 = memref.load %arg1[%c54] : memref<99xf32, #tpu.memory_space<smem>>
    %c55 = arith.constant 55 : index
    %70 = memref.load %arg1[%c55] : memref<99xf32, #tpu.memory_space<smem>>
    %c56 = arith.constant 56 : index
    %71 = memref.load %arg1[%c56] : memref<99xf32, #tpu.memory_space<smem>>
    %c57 = arith.constant 57 : index
    %72 = memref.load %arg1[%c57] : memref<99xf32, #tpu.memory_space<smem>>
    %c58 = arith.constant 58 : index
    %73 = memref.load %arg1[%c58] : memref<99xf32, #tpu.memory_space<smem>>
    %c59 = arith.constant 59 : index
    %74 = memref.load %arg1[%c59] : memref<99xf32, #tpu.memory_space<smem>>
    %c60 = arith.constant 60 : index
    %75 = memref.load %arg1[%c60] : memref<99xf32, #tpu.memory_space<smem>>
    %c61 = arith.constant 61 : index
    %76 = memref.load %arg1[%c61] : memref<99xf32, #tpu.memory_space<smem>>
    %c62 = arith.constant 62 : index
    %77 = memref.load %arg1[%c62] : memref<99xf32, #tpu.memory_space<smem>>
    %c63 = arith.constant 63 : index
    %78 = memref.load %arg1[%c63] : memref<99xf32, #tpu.memory_space<smem>>
    %c64 = arith.constant 64 : index
    %79 = memref.load %arg1[%c64] : memref<99xf32, #tpu.memory_space<smem>>
    %c65 = arith.constant 65 : index
    %80 = memref.load %arg1[%c65] : memref<99xf32, #tpu.memory_space<smem>>
    %c66 = arith.constant 66 : index
    %81 = memref.load %arg1[%c66] : memref<99xf32, #tpu.memory_space<smem>>
    %c67 = arith.constant 67 : index
    %82 = memref.load %arg1[%c67] : memref<99xf32, #tpu.memory_space<smem>>
    %c68 = arith.constant 68 : index
    %83 = memref.load %arg1[%c68] : memref<99xf32, #tpu.memory_space<smem>>
    %c69 = arith.constant 69 : index
    %84 = memref.load %arg1[%c69] : memref<99xf32, #tpu.memory_space<smem>>
    %c70 = arith.constant 70 : index
    %85 = memref.load %arg1[%c70] : memref<99xf32, #tpu.memory_space<smem>>
    %c71 = arith.constant 71 : index
    %86 = memref.load %arg1[%c71] : memref<99xf32, #tpu.memory_space<smem>>
    %c72 = arith.constant 72 : index
    %87 = memref.load %arg1[%c72] : memref<99xf32, #tpu.memory_space<smem>>
    %c73 = arith.constant 73 : index
    %88 = memref.load %arg1[%c73] : memref<99xf32, #tpu.memory_space<smem>>
    %c74 = arith.constant 74 : index
    %89 = memref.load %arg1[%c74] : memref<99xf32, #tpu.memory_space<smem>>
    %c75 = arith.constant 75 : index
    %90 = memref.load %arg1[%c75] : memref<99xf32, #tpu.memory_space<smem>>
    %c76 = arith.constant 76 : index
    %91 = memref.load %arg1[%c76] : memref<99xf32, #tpu.memory_space<smem>>
    %c77 = arith.constant 77 : index
    %92 = memref.load %arg1[%c77] : memref<99xf32, #tpu.memory_space<smem>>
    %c78 = arith.constant 78 : index
    %93 = memref.load %arg1[%c78] : memref<99xf32, #tpu.memory_space<smem>>
    %c79 = arith.constant 79 : index
    %94 = memref.load %arg1[%c79] : memref<99xf32, #tpu.memory_space<smem>>
    %c80 = arith.constant 80 : index
    %95 = memref.load %arg1[%c80] : memref<99xf32, #tpu.memory_space<smem>>
    %c81 = arith.constant 81 : index
    %96 = memref.load %arg1[%c81] : memref<99xf32, #tpu.memory_space<smem>>
    %c82 = arith.constant 82 : index
    %97 = memref.load %arg1[%c82] : memref<99xf32, #tpu.memory_space<smem>>
    %c83 = arith.constant 83 : index
    %98 = memref.load %arg1[%c83] : memref<99xf32, #tpu.memory_space<smem>>
    %c84 = arith.constant 84 : index
    %99 = memref.load %arg1[%c84] : memref<99xf32, #tpu.memory_space<smem>>
    %c85 = arith.constant 85 : index
    %100 = memref.load %arg1[%c85] : memref<99xf32, #tpu.memory_space<smem>>
    %c86 = arith.constant 86 : index
    %101 = memref.load %arg1[%c86] : memref<99xf32, #tpu.memory_space<smem>>
    %c87 = arith.constant 87 : index
    %102 = memref.load %arg1[%c87] : memref<99xf32, #tpu.memory_space<smem>>
    %c88 = arith.constant 88 : index
    %103 = memref.load %arg1[%c88] : memref<99xf32, #tpu.memory_space<smem>>
    %c89 = arith.constant 89 : index
    %104 = memref.load %arg1[%c89] : memref<99xf32, #tpu.memory_space<smem>>
    %c90 = arith.constant 90 : index
    %105 = memref.load %arg1[%c90] : memref<99xf32, #tpu.memory_space<smem>>
    %c91 = arith.constant 91 : index
    %106 = memref.load %arg1[%c91] : memref<99xf32, #tpu.memory_space<smem>>
    %c92 = arith.constant 92 : index
    %107 = memref.load %arg1[%c92] : memref<99xf32, #tpu.memory_space<smem>>
    %c93 = arith.constant 93 : index
    %108 = memref.load %arg1[%c93] : memref<99xf32, #tpu.memory_space<smem>>
    %c94 = arith.constant 94 : index
    %109 = memref.load %arg1[%c94] : memref<99xf32, #tpu.memory_space<smem>>
    %c95 = arith.constant 95 : index
    %110 = memref.load %arg1[%c95] : memref<99xf32, #tpu.memory_space<smem>>
    %c96 = arith.constant 96 : index
    %111 = memref.load %arg1[%c96] : memref<99xf32, #tpu.memory_space<smem>>
    %c97 = arith.constant 97 : index
    %112 = memref.load %arg1[%c97] : memref<99xf32, #tpu.memory_space<smem>>
    %c98 = arith.constant 98 : index
    %113 = memref.load %arg1[%c98] : memref<99xf32, #tpu.memory_space<smem>>
    %114 = vector.broadcast %113 : f32 to vector<1x256xf32>
    %c0_20 = arith.constant 0 : index
    %c0_21 = arith.constant 0 : index
    %c0_22 = arith.constant 0 : index
    %115 = vector.load %arg5[%c0_20, %c0_21, %c0_22] : memref<2x1x358xf32, #tpu.memory_space<vmem>>, vector<1x1x256xf32>
    %116 = vector.shape_cast %115 : vector<1x1x256xf32> to vector<1x256xf32>
    %117 = vector.broadcast %15 : f32 to vector<1x256xf32>
    %118 = arith.mulf %117, %116 : vector<1x256xf32>
    %c0_23 = arith.constant 0 : index
    %c0_24 = arith.constant 0 : index
    %c16_25 = arith.constant 16 : index
    %119 = vector.load %arg5[%c0_23, %c0_24, %c16_25] : memref<2x1x358xf32, #tpu.memory_space<vmem>>, vector<1x1x256xf32>
    %120 = vector.shape_cast %119 : vector<1x1x256xf32> to vector<1x256xf32>
    %121 = vector.broadcast %22 : f32 to vector<1x256xf32>
    %122 = arith.mulf %121, %120 : vector<1x256xf32>
    %123 = arith.addf %118, %122 : vector<1x256xf32>
    %c0_26 = arith.constant 0 : index
    %c0_27 = arith.constant 0 : index
    %c32_28 = arith.constant 32 : index
    %124 = vector.load %arg5[%c0_26, %c0_27, %c32_28] : memref<2x1x358xf32, #tpu.memory_space<vmem>>, vector<1x1x256xf32>
    %125 = vector.shape_cast %124 : vector<1x1x256xf32> to vector<1x256xf32>
    %126 = vector.broadcast %29 : f32 to vector<1x256xf32>
    %127 = arith.mulf %126, %125 : vector<1x256xf32>
    %128 = arith.addf %123, %127 : vector<1x256xf32>
    %c0_29 = arith.constant 0 : index
    %c0_30 = arith.constant 0 : index
    %c48_31 = arith.constant 48 : index
    %129 = vector.load %arg5[%c0_29, %c0_30, %c48_31] : memref<2x1x358xf32, #tpu.memory_space<vmem>>, vector<1x1x256xf32>
    %130 = vector.shape_cast %129 : vector<1x1x256xf32> to vector<1x256xf32>
    %131 = vector.broadcast %36 : f32 to vector<1x256xf32>
    %132 = arith.mulf %131, %130 : vector<1x256xf32>
    %133 = arith.addf %128, %132 : vector<1x256xf32>
    %c0_32 = arith.constant 0 : index
    %c0_33 = arith.constant 0 : index
    %c64_34 = arith.constant 64 : index
    %134 = vector.load %arg5[%c0_32, %c0_33, %c64_34] : memref<2x1x358xf32, #tpu.memory_space<vmem>>, vector<1x1x256xf32>
    %135 = vector.shape_cast %134 : vector<1x1x256xf32> to vector<1x256xf32>
    %136 = vector.broadcast %43 : f32 to vector<1x256xf32>
    %137 = arith.mulf %136, %135 : vector<1x256xf32>
    %138 = arith.addf %133, %137 : vector<1x256xf32>
    %c0_35 = arith.constant 0 : index
    %c0_36 = arith.constant 0 : index
    %c80_37 = arith.constant 80 : index
    %139 = vector.load %arg5[%c0_35, %c0_36, %c80_37] : memref<2x1x358xf32, #tpu.memory_space<vmem>>, vector<1x1x256xf32>
    %140 = vector.shape_cast %139 : vector<1x1x256xf32> to vector<1x256xf32>
    %141 = vector.broadcast %50 : f32 to vector<1x256xf32>
    %142 = arith.mulf %141, %140 : vector<1x256xf32>
    %143 = arith.addf %138, %142 : vector<1x256xf32>
    %c0_38 = arith.constant 0 : index
    %c0_39 = arith.constant 0 : index
    %c96_40 = arith.constant 96 : index
    %144 = vector.load %arg5[%c0_38, %c0_39, %c96_40] : memref<2x1x358xf32, #tpu.memory_space<vmem>>, vector<1x1x256xf32>
    %145 = vector.shape_cast %144 : vector<1x1x256xf32> to vector<1x256xf32>
    %146 = vector.broadcast %57 : f32 to vector<1x256xf32>
    %147 = arith.mulf %146, %145 : vector<1x256xf32>
    %148 = arith.addf %143, %147 : vector<1x256xf32>
    %c1_41 = arith.constant 1 : index
    %c0_42 = arith.constant 0 : index
    %c0_43 = arith.constant 0 : index
    %149 = vector.load %arg5[%c1_41, %c0_42, %c0_43] : memref<2x1x358xf32, #tpu.memory_space<vmem>>, vector<1x1x256xf32>
    %150 = vector.shape_cast %149 : vector<1x1x256xf32> to vector<1x256xf32>
    %151 = vector.broadcast %64 : f32 to vector<1x256xf32>
    %152 = arith.mulf %151, %150 : vector<1x256xf32>
    %153 = arith.addf %148, %152 : vector<1x256xf32>
    %c1_44 = arith.constant 1 : index
    %c0_45 = arith.constant 0 : index
    %c16_46 = arith.constant 16 : index
    %154 = vector.load %arg5[%c1_44, %c0_45, %c16_46] : memref<2x1x358xf32, #tpu.memory_space<vmem>>, vector<1x1x256xf32>
    %155 = vector.shape_cast %154 : vector<1x1x256xf32> to vector<1x256xf32>
    %156 = vector.broadcast %71 : f32 to vector<1x256xf32>
    %157 = arith.mulf %156, %155 : vector<1x256xf32>
    %158 = arith.addf %153, %157 : vector<1x256xf32>
    %c1_47 = arith.constant 1 : index
    %c0_48 = arith.constant 0 : index
    %c32_49 = arith.constant 32 : index
    %159 = vector.load %arg5[%c1_47, %c0_48, %c32_49] : memref<2x1x358xf32, #tpu.memory_space<vmem>>, vector<1x1x256xf32>
    %160 = vector.shape_cast %159 : vector<1x1x256xf32> to vector<1x256xf32>
    %161 = vector.broadcast %78 : f32 to vector<1x256xf32>
    %162 = arith.mulf %161, %160 : vector<1x256xf32>
    %163 = arith.addf %158, %162 : vector<1x256xf32>
    %c1_50 = arith.constant 1 : index
    %c0_51 = arith.constant 0 : index
    %c48_52 = arith.constant 48 : index
    %164 = vector.load %arg5[%c1_50, %c0_51, %c48_52] : memref<2x1x358xf32, #tpu.memory_space<vmem>>, vector<1x1x256xf32>
    %165 = vector.shape_cast %164 : vector<1x1x256xf32> to vector<1x256xf32>
    %166 = vector.broadcast %85 : f32 to vector<1x256xf32>
    %167 = arith.mulf %166, %165 : vector<1x256xf32>
    %168 = arith.addf %163, %167 : vector<1x256xf32>
    %c1_53 = arith.constant 1 : index
    %c0_54 = arith.constant 0 : index
    %c64_55 = arith.constant 64 : index
    %169 = vector.load %arg5[%c1_53, %c0_54, %c64_55] : memref<2x1x358xf32, #tpu.memory_space<vmem>>, vector<1x1x256xf32>
    %170 = vector.shape_cast %169 : vector<1x1x256xf32> to vector<1x256xf32>
    %171 = vector.broadcast %92 : f32 to vector<1x256xf32>
    %172 = arith.mulf %171, %170 : vector<1x256xf32>
    %173 = arith.addf %168, %172 : vector<1x256xf32>
    %c1_56 = arith.constant 1 : index
    %c0_57 = arith.constant 0 : index
    %c80_58 = arith.constant 80 : index
    %174 = vector.load %arg5[%c1_56, %c0_57, %c80_58] : memref<2x1x358xf32, #tpu.memory_space<vmem>>, vector<1x1x256xf32>
    %175 = vector.shape_cast %174 : vector<1x1x256xf32> to vector<1x256xf32>
    %176 = vector.broadcast %99 : f32 to vector<1x256xf32>
    %177 = arith.mulf %176, %175 : vector<1x256xf32>
    %178 = arith.addf %173, %177 : vector<1x256xf32>
    %c1_59 = arith.constant 1 : index
    %c0_60 = arith.constant 0 : index
    %c96_61 = arith.constant 96 : index
    %179 = vector.load %arg5[%c1_59, %c0_60, %c96_61] : memref<2x1x358xf32, #tpu.memory_space<vmem>>, vector<1x1x256xf32>
    %180 = vector.shape_cast %179 : vector<1x1x256xf32> to vector<1x256xf32>
    %181 = vector.broadcast %106 : f32 to vector<1x256xf32>
    %182 = arith.mulf %181, %180 : vector<1x256xf32>
    %183 = arith.addf %178, %182 : vector<1x256xf32>
    %c3_i32 = arith.constant 3 : i32
    %184 = vector.broadcast %c3_i32 : i32 to vector<1x256xi32>
    %185 = arith.cmpi sge, %6, %184 : vector<1x256xi32>
    %cst_62 = arith.constant 0.000000e+00 : f32
    %186 = vector.broadcast %cst_62 : f32 to vector<1x256xf32>
    %187 = arith.select %185, %183, %186 : vector<1x256xi1>, vector<1x256xf32>
    %188 = arith.addf %114, %187 : vector<1x256xf32>
    %c0_63 = arith.constant 0 : index
    %c0_64 = arith.constant 0 : index
    %c1_65 = arith.constant 1 : index
    %189 = vector.load %arg5[%c0_63, %c0_64, %c1_65] : memref<2x1x358xf32, #tpu.memory_space<vmem>>, vector<1x1x256xf32>
    %190 = vector.shape_cast %189 : vector<1x1x256xf32> to vector<1x256xf32>
    %191 = vector.broadcast %16 : f32 to vector<1x256xf32>
    %192 = arith.mulf %191, %190 : vector<1x256xf32>
    %c0_66 = arith.constant 0 : index
    %c0_67 = arith.constant 0 : index
    %c17_68 = arith.constant 17 : index
    %193 = vector.load %arg5[%c0_66, %c0_67, %c17_68] : memref<2x1x358xf32, #tpu.memory_space<vmem>>, vector<1x1x256xf32>
    %194 = vector.shape_cast %193 : vector<1x1x256xf32> to vector<1x256xf32>
    %195 = vector.broadcast %23 : f32 to vector<1x256xf32>
    %196 = arith.mulf %195, %194 : vector<1x256xf32>
    %197 = arith.addf %192, %196 : vector<1x256xf32>
    %c0_69 = arith.constant 0 : index
    %c0_70 = arith.constant 0 : index
    %c33_71 = arith.constant 33 : index
    %198 = vector.load %arg5[%c0_69, %c0_70, %c33_71] : memref<2x1x358xf32, #tpu.memory_space<vmem>>, vector<1x1x256xf32>
    %199 = vector.shape_cast %198 : vector<1x1x256xf32> to vector<1x256xf32>
    %200 = vector.broadcast %30 : f32 to vector<1x256xf32>
    %201 = arith.mulf %200, %199 : vector<1x256xf32>
    %202 = arith.addf %197, %201 : vector<1x256xf32>
    %c0_72 = arith.constant 0 : index
    %c0_73 = arith.constant 0 : index
    %c49_74 = arith.constant 49 : index
    %203 = vector.load %arg5[%c0_72, %c0_73, %c49_74] : memref<2x1x358xf32, #tpu.memory_space<vmem>>, vector<1x1x256xf32>
    %204 = vector.shape_cast %203 : vector<1x1x256xf32> to vector<1x256xf32>
    %205 = vector.broadcast %37 : f32 to vector<1x256xf32>
    %206 = arith.mulf %205, %204 : vector<1x256xf32>
    %207 = arith.addf %202, %206 : vector<1x256xf32>
    %c0_75 = arith.constant 0 : index
    %c0_76 = arith.constant 0 : index
    %c65_77 = arith.constant 65 : index
    %208 = vector.load %arg5[%c0_75, %c0_76, %c65_77] : memref<2x1x358xf32, #tpu.memory_space<vmem>>, vector<1x1x256xf32>
    %209 = vector.shape_cast %208 : vector<1x1x256xf32> to vector<1x256xf32>
    %210 = vector.broadcast %44 : f32 to vector<1x256xf32>
    %211 = arith.mulf %210, %209 : vector<1x256xf32>
    %212 = arith.addf %207, %211 : vector<1x256xf32>
    %c0_78 = arith.constant 0 : index
    %c0_79 = arith.constant 0 : index
    %c81_80 = arith.constant 81 : index
    %213 = vector.load %arg5[%c0_78, %c0_79, %c81_80] : memref<2x1x358xf32, #tpu.memory_space<vmem>>, vector<1x1x256xf32>
    %214 = vector.shape_cast %213 : vector<1x1x256xf32> to vector<1x256xf32>
    %215 = vector.broadcast %51 : f32 to vector<1x256xf32>
    %216 = arith.mulf %215, %214 : vector<1x256xf32>
    %217 = arith.addf %212, %216 : vector<1x256xf32>
    %c0_81 = arith.constant 0 : index
    %c0_82 = arith.constant 0 : index
    %c97_83 = arith.constant 97 : index
    %218 = vector.load %arg5[%c0_81, %c0_82, %c97_83] : memref<2x1x358xf32, #tpu.memory_space<vmem>>, vector<1x1x256xf32>
    %219 = vector.shape_cast %218 : vector<1x1x256xf32> to vector<1x256xf32>
    %220 = vector.broadcast %58 : f32 to vector<1x256xf32>
    %221 = arith.mulf %220, %219 : vector<1x256xf32>
    %222 = arith.addf %217, %221 : vector<1x256xf32>
    %c1_84 = arith.constant 1 : index
    %c0_85 = arith.constant 0 : index
    %c1_86 = arith.constant 1 : index
    %223 = vector.load %arg5[%c1_84, %c0_85, %c1_86] : memref<2x1x358xf32, #tpu.memory_space<vmem>>, vector<1x1x256xf32>
    %224 = vector.shape_cast %223 : vector<1x1x256xf32> to vector<1x256xf32>
    %225 = vector.broadcast %65 : f32 to vector<1x256xf32>
    %226 = arith.mulf %225, %224 : vector<1x256xf32>
    %227 = arith.addf %222, %226 : vector<1x256xf32>
    %c1_87 = arith.constant 1 : index
    %c0_88 = arith.constant 0 : index
    %c17_89 = arith.constant 17 : index
    %228 = vector.load %arg5[%c1_87, %c0_88, %c17_89] : memref<2x1x358xf32, #tpu.memory_space<vmem>>, vector<1x1x256xf32>
    %229 = vector.shape_cast %228 : vector<1x1x256xf32> to vector<1x256xf32>
    %230 = vector.broadcast %72 : f32 to vector<1x256xf32>
    %231 = arith.mulf %230, %229 : vector<1x256xf32>
    %232 = arith.addf %227, %231 : vector<1x256xf32>
    %c1_90 = arith.constant 1 : index
    %c0_91 = arith.constant 0 : index
    %c33_92 = arith.constant 33 : index
    %233 = vector.load %arg5[%c1_90, %c0_91, %c33_92] : memref<2x1x358xf32, #tpu.memory_space<vmem>>, vector<1x1x256xf32>
    %234 = vector.shape_cast %233 : vector<1x1x256xf32> to vector<1x256xf32>
    %235 = vector.broadcast %79 : f32 to vector<1x256xf32>
    %236 = arith.mulf %235, %234 : vector<1x256xf32>
    %237 = arith.addf %232, %236 : vector<1x256xf32>
    %c1_93 = arith.constant 1 : index
    %c0_94 = arith.constant 0 : index
    %c49_95 = arith.constant 49 : index
    %238 = vector.load %arg5[%c1_93, %c0_94, %c49_95] : memref<2x1x358xf32, #tpu.memory_space<vmem>>, vector<1x1x256xf32>
    %239 = vector.shape_cast %238 : vector<1x1x256xf32> to vector<1x256xf32>
    %240 = vector.broadcast %86 : f32 to vector<1x256xf32>
    %241 = arith.mulf %240, %239 : vector<1x256xf32>
    %242 = arith.addf %237, %241 : vector<1x256xf32>
    %c1_96 = arith.constant 1 : index
    %c0_97 = arith.constant 0 : index
    %c65_98 = arith.constant 65 : index
    %243 = vector.load %arg5[%c1_96, %c0_97, %c65_98] : memref<2x1x358xf32, #tpu.memory_space<vmem>>, vector<1x1x256xf32>
    %244 = vector.shape_cast %243 : vector<1x1x256xf32> to vector<1x256xf32>
    %245 = vector.broadcast %93 : f32 to vector<1x256xf32>
    %246 = arith.mulf %245, %244 : vector<1x256xf32>
    %247 = arith.addf %242, %246 : vector<1x256xf32>
    %c1_99 = arith.constant 1 : index
    %c0_100 = arith.constant 0 : index
    %c81_101 = arith.constant 81 : index
    %248 = vector.load %arg5[%c1_99, %c0_100, %c81_101] : memref<2x1x358xf32, #tpu.memory_space<vmem>>, vector<1x1x256xf32>
    %249 = vector.shape_cast %248 : vector<1x1x256xf32> to vector<1x256xf32>
    %250 = vector.broadcast %100 : f32 to vector<1x256xf32>
    %251 = arith.mulf %250, %249 : vector<1x256xf32>
    %252 = arith.addf %247, %251 : vector<1x256xf32>
    %c1_102 = arith.constant 1 : index
    %c0_103 = arith.constant 0 : index
    %c97_104 = arith.constant 97 : index
    %253 = vector.load %arg5[%c1_102, %c0_103, %c97_104] : memref<2x1x358xf32, #tpu.memory_space<vmem>>, vector<1x1x256xf32>
    %254 = vector.shape_cast %253 : vector<1x1x256xf32> to vector<1x256xf32>
    %255 = vector.broadcast %107 : f32 to vector<1x256xf32>
    %256 = arith.mulf %255, %254 : vector<1x256xf32>
    %257 = arith.addf %252, %256 : vector<1x256xf32>
    %c2_i32 = arith.constant 2 : i32
    %258 = vector.broadcast %c2_i32 : i32 to vector<1x256xi32>
    %259 = arith.cmpi sge, %6, %258 : vector<1x256xi32>
    %cst_105 = arith.constant 0.000000e+00 : f32
    %260 = vector.broadcast %cst_105 : f32 to vector<1x256xf32>
    %261 = arith.select %259, %257, %260 : vector<1x256xi1>, vector<1x256xf32>
    %262 = arith.addf %188, %261 : vector<1x256xf32>
    %c0_106 = arith.constant 0 : index
    %c0_107 = arith.constant 0 : index
    %c2_108 = arith.constant 2 : index
    %263 = vector.load %arg5[%c0_106, %c0_107, %c2_108] : memref<2x1x358xf32, #tpu.memory_space<vmem>>, vector<1x1x256xf32>
    %264 = vector.shape_cast %263 : vector<1x1x256xf32> to vector<1x256xf32>
    %265 = vector.broadcast %17 : f32 to vector<1x256xf32>
    %266 = arith.mulf %265, %264 : vector<1x256xf32>
    %c0_109 = arith.constant 0 : index
    %c0_110 = arith.constant 0 : index
    %c18_111 = arith.constant 18 : index
    %267 = vector.load %arg5[%c0_109, %c0_110, %c18_111] : memref<2x1x358xf32, #tpu.memory_space<vmem>>, vector<1x1x256xf32>
    %268 = vector.shape_cast %267 : vector<1x1x256xf32> to vector<1x256xf32>
    %269 = vector.broadcast %24 : f32 to vector<1x256xf32>
    %270 = arith.mulf %269, %268 : vector<1x256xf32>
    %271 = arith.addf %266, %270 : vector<1x256xf32>
    %c0_112 = arith.constant 0 : index
    %c0_113 = arith.constant 0 : index
    %c34_114 = arith.constant 34 : index
    %272 = vector.load %arg5[%c0_112, %c0_113, %c34_114] : memref<2x1x358xf32, #tpu.memory_space<vmem>>, vector<1x1x256xf32>
    %273 = vector.shape_cast %272 : vector<1x1x256xf32> to vector<1x256xf32>
    %274 = vector.broadcast %31 : f32 to vector<1x256xf32>
    %275 = arith.mulf %274, %273 : vector<1x256xf32>
    %276 = arith.addf %271, %275 : vector<1x256xf32>
    %c0_115 = arith.constant 0 : index
    %c0_116 = arith.constant 0 : index
    %c50_117 = arith.constant 50 : index
    %277 = vector.load %arg5[%c0_115, %c0_116, %c50_117] : memref<2x1x358xf32, #tpu.memory_space<vmem>>, vector<1x1x256xf32>
    %278 = vector.shape_cast %277 : vector<1x1x256xf32> to vector<1x256xf32>
    %279 = vector.broadcast %38 : f32 to vector<1x256xf32>
    %280 = arith.mulf %279, %278 : vector<1x256xf32>
    %281 = arith.addf %276, %280 : vector<1x256xf32>
    %c0_118 = arith.constant 0 : index
    %c0_119 = arith.constant 0 : index
    %c66_120 = arith.constant 66 : index
    %282 = vector.load %arg5[%c0_118, %c0_119, %c66_120] : memref<2x1x358xf32, #tpu.memory_space<vmem>>, vector<1x1x256xf32>
    %283 = vector.shape_cast %282 : vector<1x1x256xf32> to vector<1x256xf32>
    %284 = vector.broadcast %45 : f32 to vector<1x256xf32>
    %285 = arith.mulf %284, %283 : vector<1x256xf32>
    %286 = arith.addf %281, %285 : vector<1x256xf32>
    %c0_121 = arith.constant 0 : index
    %c0_122 = arith.constant 0 : index
    %c82_123 = arith.constant 82 : index
    %287 = vector.load %arg5[%c0_121, %c0_122, %c82_123] : memref<2x1x358xf32, #tpu.memory_space<vmem>>, vector<1x1x256xf32>
    %288 = vector.shape_cast %287 : vector<1x1x256xf32> to vector<1x256xf32>
    %289 = vector.broadcast %52 : f32 to vector<1x256xf32>
    %290 = arith.mulf %289, %288 : vector<1x256xf32>
    %291 = arith.addf %286, %290 : vector<1x256xf32>
    %c0_124 = arith.constant 0 : index
    %c0_125 = arith.constant 0 : index
    %c98_126 = arith.constant 98 : index
    %292 = vector.load %arg5[%c0_124, %c0_125, %c98_126] : memref<2x1x358xf32, #tpu.memory_space<vmem>>, vector<1x1x256xf32>
    %293 = vector.shape_cast %292 : vector<1x1x256xf32> to vector<1x256xf32>
    %294 = vector.broadcast %59 : f32 to vector<1x256xf32>
    %295 = arith.mulf %294, %293 : vector<1x256xf32>
    %296 = arith.addf %291, %295 : vector<1x256xf32>
    %c1_127 = arith.constant 1 : index
    %c0_128 = arith.constant 0 : index
    %c2_129 = arith.constant 2 : index
    %297 = vector.load %arg5[%c1_127, %c0_128, %c2_129] : memref<2x1x358xf32, #tpu.memory_space<vmem>>, vector<1x1x256xf32>
    %298 = vector.shape_cast %297 : vector<1x1x256xf32> to vector<1x256xf32>
    %299 = vector.broadcast %66 : f32 to vector<1x256xf32>
    %300 = arith.mulf %299, %298 : vector<1x256xf32>
    %301 = arith.addf %296, %300 : vector<1x256xf32>
    %c1_130 = arith.constant 1 : index
    %c0_131 = arith.constant 0 : index
    %c18_132 = arith.constant 18 : index
    %302 = vector.load %arg5[%c1_130, %c0_131, %c18_132] : memref<2x1x358xf32, #tpu.memory_space<vmem>>, vector<1x1x256xf32>
    %303 = vector.shape_cast %302 : vector<1x1x256xf32> to vector<1x256xf32>
    %304 = vector.broadcast %73 : f32 to vector<1x256xf32>
    %305 = arith.mulf %304, %303 : vector<1x256xf32>
    %306 = arith.addf %301, %305 : vector<1x256xf32>
    %c1_133 = arith.constant 1 : index
    %c0_134 = arith.constant 0 : index
    %c34_135 = arith.constant 34 : index
    %307 = vector.load %arg5[%c1_133, %c0_134, %c34_135] : memref<2x1x358xf32, #tpu.memory_space<vmem>>, vector<1x1x256xf32>
    %308 = vector.shape_cast %307 : vector<1x1x256xf32> to vector<1x256xf32>
    %309 = vector.broadcast %80 : f32 to vector<1x256xf32>
    %310 = arith.mulf %309, %308 : vector<1x256xf32>
    %311 = arith.addf %306, %310 : vector<1x256xf32>
    %c1_136 = arith.constant 1 : index
    %c0_137 = arith.constant 0 : index
    %c50_138 = arith.constant 50 : index
    %312 = vector.load %arg5[%c1_136, %c0_137, %c50_138] : memref<2x1x358xf32, #tpu.memory_space<vmem>>, vector<1x1x256xf32>
    %313 = vector.shape_cast %312 : vector<1x1x256xf32> to vector<1x256xf32>
    %314 = vector.broadcast %87 : f32 to vector<1x256xf32>
    %315 = arith.mulf %314, %313 : vector<1x256xf32>
    %316 = arith.addf %311, %315 : vector<1x256xf32>
    %c1_139 = arith.constant 1 : index
    %c0_140 = arith.constant 0 : index
    %c66_141 = arith.constant 66 : index
    %317 = vector.load %arg5[%c1_139, %c0_140, %c66_141] : memref<2x1x358xf32, #tpu.memory_space<vmem>>, vector<1x1x256xf32>
    %318 = vector.shape_cast %317 : vector<1x1x256xf32> to vector<1x256xf32>
    %319 = vector.broadcast %94 : f32 to vector<1x256xf32>
    %320 = arith.mulf %319, %318 : vector<1x256xf32>
    %321 = arith.addf %316, %320 : vector<1x256xf32>
    %c1_142 = arith.constant 1 : index
    %c0_143 = arith.constant 0 : index
    %c82_144 = arith.constant 82 : index
    %322 = vector.load %arg5[%c1_142, %c0_143, %c82_144] : memref<2x1x358xf32, #tpu.memory_space<vmem>>, vector<1x1x256xf32>
    %323 = vector.shape_cast %322 : vector<1x1x256xf32> to vector<1x256xf32>
    %324 = vector.broadcast %101 : f32 to vector<1x256xf32>
    %325 = arith.mulf %324, %323 : vector<1x256xf32>
    %326 = arith.addf %321, %325 : vector<1x256xf32>
    %c1_145 = arith.constant 1 : index
    %c0_146 = arith.constant 0 : index
    %c98_147 = arith.constant 98 : index
    %327 = vector.load %arg5[%c1_145, %c0_146, %c98_147] : memref<2x1x358xf32, #tpu.memory_space<vmem>>, vector<1x1x256xf32>
    %328 = vector.shape_cast %327 : vector<1x1x256xf32> to vector<1x256xf32>
    %329 = vector.broadcast %108 : f32 to vector<1x256xf32>
    %330 = arith.mulf %329, %328 : vector<1x256xf32>
    %331 = arith.addf %326, %330 : vector<1x256xf32>
    %c1_i32 = arith.constant 1 : i32
    %332 = vector.broadcast %c1_i32 : i32 to vector<1x256xi32>
    %333 = arith.cmpi sge, %6, %332 : vector<1x256xi32>
    %cst_148 = arith.constant 0.000000e+00 : f32
    %334 = vector.broadcast %cst_148 : f32 to vector<1x256xf32>
    %335 = arith.select %333, %331, %334 : vector<1x256xi1>, vector<1x256xf32>
    %336 = arith.addf %262, %335 : vector<1x256xf32>
    %c0_149 = arith.constant 0 : index
    %c0_150 = arith.constant 0 : index
    %c3_151 = arith.constant 3 : index
    %337 = vector.load %arg5[%c0_149, %c0_150, %c3_151] : memref<2x1x358xf32, #tpu.memory_space<vmem>>, vector<1x1x256xf32>
    %338 = vector.shape_cast %337 : vector<1x1x256xf32> to vector<1x256xf32>
    %339 = vector.broadcast %18 : f32 to vector<1x256xf32>
    %340 = arith.mulf %339, %338 : vector<1x256xf32>
    %c0_152 = arith.constant 0 : index
    %c0_153 = arith.constant 0 : index
    %c19_154 = arith.constant 19 : index
    %341 = vector.load %arg5[%c0_152, %c0_153, %c19_154] : memref<2x1x358xf32, #tpu.memory_space<vmem>>, vector<1x1x256xf32>
    %342 = vector.shape_cast %341 : vector<1x1x256xf32> to vector<1x256xf32>
    %343 = vector.broadcast %25 : f32 to vector<1x256xf32>
    %344 = arith.mulf %343, %342 : vector<1x256xf32>
    %345 = arith.addf %340, %344 : vector<1x256xf32>
    %c0_155 = arith.constant 0 : index
    %c0_156 = arith.constant 0 : index
    %c35_157 = arith.constant 35 : index
    %346 = vector.load %arg5[%c0_155, %c0_156, %c35_157] : memref<2x1x358xf32, #tpu.memory_space<vmem>>, vector<1x1x256xf32>
    %347 = vector.shape_cast %346 : vector<1x1x256xf32> to vector<1x256xf32>
    %348 = vector.broadcast %32 : f32 to vector<1x256xf32>
    %349 = arith.mulf %348, %347 : vector<1x256xf32>
    %350 = arith.addf %345, %349 : vector<1x256xf32>
    %c0_158 = arith.constant 0 : index
    %c0_159 = arith.constant 0 : index
    %c51_160 = arith.constant 51 : index
    %351 = vector.load %arg5[%c0_158, %c0_159, %c51_160] : memref<2x1x358xf32, #tpu.memory_space<vmem>>, vector<1x1x256xf32>
    %352 = vector.shape_cast %351 : vector<1x1x256xf32> to vector<1x256xf32>
    %353 = vector.broadcast %39 : f32 to vector<1x256xf32>
    %354 = arith.mulf %353, %352 : vector<1x256xf32>
    %355 = arith.addf %350, %354 : vector<1x256xf32>
    %c0_161 = arith.constant 0 : index
    %c0_162 = arith.constant 0 : index
    %c67_163 = arith.constant 67 : index
    %356 = vector.load %arg5[%c0_161, %c0_162, %c67_163] : memref<2x1x358xf32, #tpu.memory_space<vmem>>, vector<1x1x256xf32>
    %357 = vector.shape_cast %356 : vector<1x1x256xf32> to vector<1x256xf32>
    %358 = vector.broadcast %46 : f32 to vector<1x256xf32>
    %359 = arith.mulf %358, %357 : vector<1x256xf32>
    %360 = arith.addf %355, %359 : vector<1x256xf32>
    %c0_164 = arith.constant 0 : index
    %c0_165 = arith.constant 0 : index
    %c83_166 = arith.constant 83 : index
    %361 = vector.load %arg5[%c0_164, %c0_165, %c83_166] : memref<2x1x358xf32, #tpu.memory_space<vmem>>, vector<1x1x256xf32>
    %362 = vector.shape_cast %361 : vector<1x1x256xf32> to vector<1x256xf32>
    %363 = vector.broadcast %53 : f32 to vector<1x256xf32>
    %364 = arith.mulf %363, %362 : vector<1x256xf32>
    %365 = arith.addf %360, %364 : vector<1x256xf32>
    %c0_167 = arith.constant 0 : index
    %c0_168 = arith.constant 0 : index
    %c99 = arith.constant 99 : index
    %366 = vector.load %arg5[%c0_167, %c0_168, %c99] : memref<2x1x358xf32, #tpu.memory_space<vmem>>, vector<1x1x256xf32>
    %367 = vector.shape_cast %366 : vector<1x1x256xf32> to vector<1x256xf32>
    %368 = vector.broadcast %60 : f32 to vector<1x256xf32>
    %369 = arith.mulf %368, %367 : vector<1x256xf32>
    %370 = arith.addf %365, %369 : vector<1x256xf32>
    %c1_169 = arith.constant 1 : index
    %c0_170 = arith.constant 0 : index
    %c3_171 = arith.constant 3 : index
    %371 = vector.load %arg5[%c1_169, %c0_170, %c3_171] : memref<2x1x358xf32, #tpu.memory_space<vmem>>, vector<1x1x256xf32>
    %372 = vector.shape_cast %371 : vector<1x1x256xf32> to vector<1x256xf32>
    %373 = vector.broadcast %67 : f32 to vector<1x256xf32>
    %374 = arith.mulf %373, %372 : vector<1x256xf32>
    %375 = arith.addf %370, %374 : vector<1x256xf32>
    %c1_172 = arith.constant 1 : index
    %c0_173 = arith.constant 0 : index
    %c19_174 = arith.constant 19 : index
    %376 = vector.load %arg5[%c1_172, %c0_173, %c19_174] : memref<2x1x358xf32, #tpu.memory_space<vmem>>, vector<1x1x256xf32>
    %377 = vector.shape_cast %376 : vector<1x1x256xf32> to vector<1x256xf32>
    %378 = vector.broadcast %74 : f32 to vector<1x256xf32>
    %379 = arith.mulf %378, %377 : vector<1x256xf32>
    %380 = arith.addf %375, %379 : vector<1x256xf32>
    %c1_175 = arith.constant 1 : index
    %c0_176 = arith.constant 0 : index
    %c35_177 = arith.constant 35 : index
    %381 = vector.load %arg5[%c1_175, %c0_176, %c35_177] : memref<2x1x358xf32, #tpu.memory_space<vmem>>, vector<1x1x256xf32>
    %382 = vector.shape_cast %381 : vector<1x1x256xf32> to vector<1x256xf32>
    %383 = vector.broadcast %81 : f32 to vector<1x256xf32>
    %384 = arith.mulf %383, %382 : vector<1x256xf32>
    %385 = arith.addf %380, %384 : vector<1x256xf32>
    %c1_178 = arith.constant 1 : index
    %c0_179 = arith.constant 0 : index
    %c51_180 = arith.constant 51 : index
    %386 = vector.load %arg5[%c1_178, %c0_179, %c51_180] : memref<2x1x358xf32, #tpu.memory_space<vmem>>, vector<1x1x256xf32>
    %387 = vector.shape_cast %386 : vector<1x1x256xf32> to vector<1x256xf32>
    %388 = vector.broadcast %88 : f32 to vector<1x256xf32>
    %389 = arith.mulf %388, %387 : vector<1x256xf32>
    %390 = arith.addf %385, %389 : vector<1x256xf32>
    %c1_181 = arith.constant 1 : index
    %c0_182 = arith.constant 0 : index
    %c67_183 = arith.constant 67 : index
    %391 = vector.load %arg5[%c1_181, %c0_182, %c67_183] : memref<2x1x358xf32, #tpu.memory_space<vmem>>, vector<1x1x256xf32>
    %392 = vector.shape_cast %391 : vector<1x1x256xf32> to vector<1x256xf32>
    %393 = vector.broadcast %95 : f32 to vector<1x256xf32>
    %394 = arith.mulf %393, %392 : vector<1x256xf32>
    %395 = arith.addf %390, %394 : vector<1x256xf32>
    %c1_184 = arith.constant 1 : index
    %c0_185 = arith.constant 0 : index
    %c83_186 = arith.constant 83 : index
    %396 = vector.load %arg5[%c1_184, %c0_185, %c83_186] : memref<2x1x358xf32, #tpu.memory_space<vmem>>, vector<1x1x256xf32>
    %397 = vector.shape_cast %396 : vector<1x1x256xf32> to vector<1x256xf32>
    %398 = vector.broadcast %102 : f32 to vector<1x256xf32>
    %399 = arith.mulf %398, %397 : vector<1x256xf32>
    %400 = arith.addf %395, %399 : vector<1x256xf32>
    %c1_187 = arith.constant 1 : index
    %c0_188 = arith.constant 0 : index
    %c99_189 = arith.constant 99 : index
    %401 = vector.load %arg5[%c1_187, %c0_188, %c99_189] : memref<2x1x358xf32, #tpu.memory_space<vmem>>, vector<1x1x256xf32>
    %402 = vector.shape_cast %401 : vector<1x1x256xf32> to vector<1x256xf32>
    %403 = vector.broadcast %109 : f32 to vector<1x256xf32>
    %404 = arith.mulf %403, %402 : vector<1x256xf32>
    %405 = arith.addf %400, %404 : vector<1x256xf32>
    %406 = arith.addf %336, %405 : vector<1x256xf32>
    %c0_190 = arith.constant 0 : index
    %c0_191 = arith.constant 0 : index
    %c4_192 = arith.constant 4 : index
    %407 = vector.load %arg5[%c0_190, %c0_191, %c4_192] : memref<2x1x358xf32, #tpu.memory_space<vmem>>, vector<1x1x256xf32>
    %408 = vector.shape_cast %407 : vector<1x1x256xf32> to vector<1x256xf32>
    %409 = vector.broadcast %19 : f32 to vector<1x256xf32>
    %410 = arith.mulf %409, %408 : vector<1x256xf32>
    %c0_193 = arith.constant 0 : index
    %c0_194 = arith.constant 0 : index
    %c20_195 = arith.constant 20 : index
    %411 = vector.load %arg5[%c0_193, %c0_194, %c20_195] : memref<2x1x358xf32, #tpu.memory_space<vmem>>, vector<1x1x256xf32>
    %412 = vector.shape_cast %411 : vector<1x1x256xf32> to vector<1x256xf32>
    %413 = vector.broadcast %26 : f32 to vector<1x256xf32>
    %414 = arith.mulf %413, %412 : vector<1x256xf32>
    %415 = arith.addf %410, %414 : vector<1x256xf32>
    %c0_196 = arith.constant 0 : index
    %c0_197 = arith.constant 0 : index
    %c36_198 = arith.constant 36 : index
    %416 = vector.load %arg5[%c0_196, %c0_197, %c36_198] : memref<2x1x358xf32, #tpu.memory_space<vmem>>, vector<1x1x256xf32>
    %417 = vector.shape_cast %416 : vector<1x1x256xf32> to vector<1x256xf32>
    %418 = vector.broadcast %33 : f32 to vector<1x256xf32>
    %419 = arith.mulf %418, %417 : vector<1x256xf32>
    %420 = arith.addf %415, %419 : vector<1x256xf32>
    %c0_199 = arith.constant 0 : index
    %c0_200 = arith.constant 0 : index
    %c52_201 = arith.constant 52 : index
    %421 = vector.load %arg5[%c0_199, %c0_200, %c52_201] : memref<2x1x358xf32, #tpu.memory_space<vmem>>, vector<1x1x256xf32>
    %422 = vector.shape_cast %421 : vector<1x1x256xf32> to vector<1x256xf32>
    %423 = vector.broadcast %40 : f32 to vector<1x256xf32>
    %424 = arith.mulf %423, %422 : vector<1x256xf32>
    %425 = arith.addf %420, %424 : vector<1x256xf32>
    %c0_202 = arith.constant 0 : index
    %c0_203 = arith.constant 0 : index
    %c68_204 = arith.constant 68 : index
    %426 = vector.load %arg5[%c0_202, %c0_203, %c68_204] : memref<2x1x358xf32, #tpu.memory_space<vmem>>, vector<1x1x256xf32>
    %427 = vector.shape_cast %426 : vector<1x1x256xf32> to vector<1x256xf32>
    %428 = vector.broadcast %47 : f32 to vector<1x256xf32>
    %429 = arith.mulf %428, %427 : vector<1x256xf32>
    %430 = arith.addf %425, %429 : vector<1x256xf32>
    %c0_205 = arith.constant 0 : index
    %c0_206 = arith.constant 0 : index
    %c84_207 = arith.constant 84 : index
    %431 = vector.load %arg5[%c0_205, %c0_206, %c84_207] : memref<2x1x358xf32, #tpu.memory_space<vmem>>, vector<1x1x256xf32>
    %432 = vector.shape_cast %431 : vector<1x1x256xf32> to vector<1x256xf32>
    %433 = vector.broadcast %54 : f32 to vector<1x256xf32>
    %434 = arith.mulf %433, %432 : vector<1x256xf32>
    %435 = arith.addf %430, %434 : vector<1x256xf32>
    %c0_208 = arith.constant 0 : index
    %c0_209 = arith.constant 0 : index
    %c100 = arith.constant 100 : index
    %436 = vector.load %arg5[%c0_208, %c0_209, %c100] : memref<2x1x358xf32, #tpu.memory_space<vmem>>, vector<1x1x256xf32>
    %437 = vector.shape_cast %436 : vector<1x1x256xf32> to vector<1x256xf32>
    %438 = vector.broadcast %61 : f32 to vector<1x256xf32>
    %439 = arith.mulf %438, %437 : vector<1x256xf32>
    %440 = arith.addf %435, %439 : vector<1x256xf32>
    %c1_210 = arith.constant 1 : index
    %c0_211 = arith.constant 0 : index
    %c4_212 = arith.constant 4 : index
    %441 = vector.load %arg5[%c1_210, %c0_211, %c4_212] : memref<2x1x358xf32, #tpu.memory_space<vmem>>, vector<1x1x256xf32>
    %442 = vector.shape_cast %441 : vector<1x1x256xf32> to vector<1x256xf32>
    %443 = vector.broadcast %68 : f32 to vector<1x256xf32>
    %444 = arith.mulf %443, %442 : vector<1x256xf32>
    %445 = arith.addf %440, %444 : vector<1x256xf32>
    %c1_213 = arith.constant 1 : index
    %c0_214 = arith.constant 0 : index
    %c20_215 = arith.constant 20 : index
    %446 = vector.load %arg5[%c1_213, %c0_214, %c20_215] : memref<2x1x358xf32, #tpu.memory_space<vmem>>, vector<1x1x256xf32>
    %447 = vector.shape_cast %446 : vector<1x1x256xf32> to vector<1x256xf32>
    %448 = vector.broadcast %75 : f32 to vector<1x256xf32>
    %449 = arith.mulf %448, %447 : vector<1x256xf32>
    %450 = arith.addf %445, %449 : vector<1x256xf32>
    %c1_216 = arith.constant 1 : index
    %c0_217 = arith.constant 0 : index
    %c36_218 = arith.constant 36 : index
    %451 = vector.load %arg5[%c1_216, %c0_217, %c36_218] : memref<2x1x358xf32, #tpu.memory_space<vmem>>, vector<1x1x256xf32>
    %452 = vector.shape_cast %451 : vector<1x1x256xf32> to vector<1x256xf32>
    %453 = vector.broadcast %82 : f32 to vector<1x256xf32>
    %454 = arith.mulf %453, %452 : vector<1x256xf32>
    %455 = arith.addf %450, %454 : vector<1x256xf32>
    %c1_219 = arith.constant 1 : index
    %c0_220 = arith.constant 0 : index
    %c52_221 = arith.constant 52 : index
    %456 = vector.load %arg5[%c1_219, %c0_220, %c52_221] : memref<2x1x358xf32, #tpu.memory_space<vmem>>, vector<1x1x256xf32>
    %457 = vector.shape_cast %456 : vector<1x1x256xf32> to vector<1x256xf32>
    %458 = vector.broadcast %89 : f32 to vector<1x256xf32>
    %459 = arith.mulf %458, %457 : vector<1x256xf32>
    %460 = arith.addf %455, %459 : vector<1x256xf32>
    %c1_222 = arith.constant 1 : index
    %c0_223 = arith.constant 0 : index
    %c68_224 = arith.constant 68 : index
    %461 = vector.load %arg5[%c1_222, %c0_223, %c68_224] : memref<2x1x358xf32, #tpu.memory_space<vmem>>, vector<1x1x256xf32>
    %462 = vector.shape_cast %461 : vector<1x1x256xf32> to vector<1x256xf32>
    %463 = vector.broadcast %96 : f32 to vector<1x256xf32>
    %464 = arith.mulf %463, %462 : vector<1x256xf32>
    %465 = arith.addf %460, %464 : vector<1x256xf32>
    %c1_225 = arith.constant 1 : index
    %c0_226 = arith.constant 0 : index
    %c84_227 = arith.constant 84 : index
    %466 = vector.load %arg5[%c1_225, %c0_226, %c84_227] : memref<2x1x358xf32, #tpu.memory_space<vmem>>, vector<1x1x256xf32>
    %467 = vector.shape_cast %466 : vector<1x1x256xf32> to vector<1x256xf32>
    %468 = vector.broadcast %103 : f32 to vector<1x256xf32>
    %469 = arith.mulf %468, %467 : vector<1x256xf32>
    %470 = arith.addf %465, %469 : vector<1x256xf32>
    %c1_228 = arith.constant 1 : index
    %c0_229 = arith.constant 0 : index
    %c100_230 = arith.constant 100 : index
    %471 = vector.load %arg5[%c1_228, %c0_229, %c100_230] : memref<2x1x358xf32, #tpu.memory_space<vmem>>, vector<1x1x256xf32>
    %472 = vector.shape_cast %471 : vector<1x1x256xf32> to vector<1x256xf32>
    %473 = vector.broadcast %110 : f32 to vector<1x256xf32>
    %474 = arith.mulf %473, %472 : vector<1x256xf32>
    %475 = arith.addf %470, %474 : vector<1x256xf32>
    %c15_i32 = arith.constant 15 : i32
    %476 = vector.broadcast %c15_i32 : i32 to vector<1x256xi32>
    %477 = arith.cmpi slt, %6, %476 : vector<1x256xi32>
    %cst_231 = arith.constant 0.000000e+00 : f32
    %478 = vector.broadcast %cst_231 : f32 to vector<1x256xf32>
    %479 = arith.select %477, %475, %478 : vector<1x256xi1>, vector<1x256xf32>
    %480 = arith.addf %406, %479 : vector<1x256xf32>
    %c0_232 = arith.constant 0 : index
    %c0_233 = arith.constant 0 : index
    %c5_234 = arith.constant 5 : index
    %481 = vector.load %arg5[%c0_232, %c0_233, %c5_234] : memref<2x1x358xf32, #tpu.memory_space<vmem>>, vector<1x1x256xf32>
    %482 = vector.shape_cast %481 : vector<1x1x256xf32> to vector<1x256xf32>
    %483 = vector.broadcast %20 : f32 to vector<1x256xf32>
    %484 = arith.mulf %483, %482 : vector<1x256xf32>
    %c0_235 = arith.constant 0 : index
    %c0_236 = arith.constant 0 : index
    %c21_237 = arith.constant 21 : index
    %485 = vector.load %arg5[%c0_235, %c0_236, %c21_237] : memref<2x1x358xf32, #tpu.memory_space<vmem>>, vector<1x1x256xf32>
    %486 = vector.shape_cast %485 : vector<1x1x256xf32> to vector<1x256xf32>
    %487 = vector.broadcast %27 : f32 to vector<1x256xf32>
    %488 = arith.mulf %487, %486 : vector<1x256xf32>
    %489 = arith.addf %484, %488 : vector<1x256xf32>
    %c0_238 = arith.constant 0 : index
    %c0_239 = arith.constant 0 : index
    %c37_240 = arith.constant 37 : index
    %490 = vector.load %arg5[%c0_238, %c0_239, %c37_240] : memref<2x1x358xf32, #tpu.memory_space<vmem>>, vector<1x1x256xf32>
    %491 = vector.shape_cast %490 : vector<1x1x256xf32> to vector<1x256xf32>
    %492 = vector.broadcast %34 : f32 to vector<1x256xf32>
    %493 = arith.mulf %492, %491 : vector<1x256xf32>
    %494 = arith.addf %489, %493 : vector<1x256xf32>
    %c0_241 = arith.constant 0 : index
    %c0_242 = arith.constant 0 : index
    %c53_243 = arith.constant 53 : index
    %495 = vector.load %arg5[%c0_241, %c0_242, %c53_243] : memref<2x1x358xf32, #tpu.memory_space<vmem>>, vector<1x1x256xf32>
    %496 = vector.shape_cast %495 : vector<1x1x256xf32> to vector<1x256xf32>
    %497 = vector.broadcast %41 : f32 to vector<1x256xf32>
    %498 = arith.mulf %497, %496 : vector<1x256xf32>
    %499 = arith.addf %494, %498 : vector<1x256xf32>
    %c0_244 = arith.constant 0 : index
    %c0_245 = arith.constant 0 : index
    %c69_246 = arith.constant 69 : index
    %500 = vector.load %arg5[%c0_244, %c0_245, %c69_246] : memref<2x1x358xf32, #tpu.memory_space<vmem>>, vector<1x1x256xf32>
    %501 = vector.shape_cast %500 : vector<1x1x256xf32> to vector<1x256xf32>
    %502 = vector.broadcast %48 : f32 to vector<1x256xf32>
    %503 = arith.mulf %502, %501 : vector<1x256xf32>
    %504 = arith.addf %499, %503 : vector<1x256xf32>
    %c0_247 = arith.constant 0 : index
    %c0_248 = arith.constant 0 : index
    %c85_249 = arith.constant 85 : index
    %505 = vector.load %arg5[%c0_247, %c0_248, %c85_249] : memref<2x1x358xf32, #tpu.memory_space<vmem>>, vector<1x1x256xf32>
    %506 = vector.shape_cast %505 : vector<1x1x256xf32> to vector<1x256xf32>
    %507 = vector.broadcast %55 : f32 to vector<1x256xf32>
    %508 = arith.mulf %507, %506 : vector<1x256xf32>
    %509 = arith.addf %504, %508 : vector<1x256xf32>
    %c0_250 = arith.constant 0 : index
    %c0_251 = arith.constant 0 : index
    %c101 = arith.constant 101 : index
    %510 = vector.load %arg5[%c0_250, %c0_251, %c101] : memref<2x1x358xf32, #tpu.memory_space<vmem>>, vector<1x1x256xf32>
    %511 = vector.shape_cast %510 : vector<1x1x256xf32> to vector<1x256xf32>
    %512 = vector.broadcast %62 : f32 to vector<1x256xf32>
    %513 = arith.mulf %512, %511 : vector<1x256xf32>
    %514 = arith.addf %509, %513 : vector<1x256xf32>
    %c1_252 = arith.constant 1 : index
    %c0_253 = arith.constant 0 : index
    %c5_254 = arith.constant 5 : index
    %515 = vector.load %arg5[%c1_252, %c0_253, %c5_254] : memref<2x1x358xf32, #tpu.memory_space<vmem>>, vector<1x1x256xf32>
    %516 = vector.shape_cast %515 : vector<1x1x256xf32> to vector<1x256xf32>
    %517 = vector.broadcast %69 : f32 to vector<1x256xf32>
    %518 = arith.mulf %517, %516 : vector<1x256xf32>
    %519 = arith.addf %514, %518 : vector<1x256xf32>
    %c1_255 = arith.constant 1 : index
    %c0_256 = arith.constant 0 : index
    %c21_257 = arith.constant 21 : index
    %520 = vector.load %arg5[%c1_255, %c0_256, %c21_257] : memref<2x1x358xf32, #tpu.memory_space<vmem>>, vector<1x1x256xf32>
    %521 = vector.shape_cast %520 : vector<1x1x256xf32> to vector<1x256xf32>
    %522 = vector.broadcast %76 : f32 to vector<1x256xf32>
    %523 = arith.mulf %522, %521 : vector<1x256xf32>
    %524 = arith.addf %519, %523 : vector<1x256xf32>
    %c1_258 = arith.constant 1 : index
    %c0_259 = arith.constant 0 : index
    %c37_260 = arith.constant 37 : index
    %525 = vector.load %arg5[%c1_258, %c0_259, %c37_260] : memref<2x1x358xf32, #tpu.memory_space<vmem>>, vector<1x1x256xf32>
    %526 = vector.shape_cast %525 : vector<1x1x256xf32> to vector<1x256xf32>
    %527 = vector.broadcast %83 : f32 to vector<1x256xf32>
    %528 = arith.mulf %527, %526 : vector<1x256xf32>
    %529 = arith.addf %524, %528 : vector<1x256xf32>
    %c1_261 = arith.constant 1 : index
    %c0_262 = arith.constant 0 : index
    %c53_263 = arith.constant 53 : index
    %530 = vector.load %arg5[%c1_261, %c0_262, %c53_263] : memref<2x1x358xf32, #tpu.memory_space<vmem>>, vector<1x1x256xf32>
    %531 = vector.shape_cast %530 : vector<1x1x256xf32> to vector<1x256xf32>
    %532 = vector.broadcast %90 : f32 to vector<1x256xf32>
    %533 = arith.mulf %532, %531 : vector<1x256xf32>
    %534 = arith.addf %529, %533 : vector<1x256xf32>
    %c1_264 = arith.constant 1 : index
    %c0_265 = arith.constant 0 : index
    %c69_266 = arith.constant 69 : index
    %535 = vector.load %arg5[%c1_264, %c0_265, %c69_266] : memref<2x1x358xf32, #tpu.memory_space<vmem>>, vector<1x1x256xf32>
    %536 = vector.shape_cast %535 : vector<1x1x256xf32> to vector<1x256xf32>
    %537 = vector.broadcast %97 : f32 to vector<1x256xf32>
    %538 = arith.mulf %537, %536 : vector<1x256xf32>
    %539 = arith.addf %534, %538 : vector<1x256xf32>
    %c1_267 = arith.constant 1 : index
    %c0_268 = arith.constant 0 : index
    %c85_269 = arith.constant 85 : index
    %540 = vector.load %arg5[%c1_267, %c0_268, %c85_269] : memref<2x1x358xf32, #tpu.memory_space<vmem>>, vector<1x1x256xf32>
    %541 = vector.shape_cast %540 : vector<1x1x256xf32> to vector<1x256xf32>
    %542 = vector.broadcast %104 : f32 to vector<1x256xf32>
    %543 = arith.mulf %542, %541 : vector<1x256xf32>
    %544 = arith.addf %539, %543 : vector<1x256xf32>
    %c1_270 = arith.constant 1 : index
    %c0_271 = arith.constant 0 : index
    %c101_272 = arith.constant 101 : index
    %545 = vector.load %arg5[%c1_270, %c0_271, %c101_272] : memref<2x1x358xf32, #tpu.memory_space<vmem>>, vector<1x1x256xf32>
    %546 = vector.shape_cast %545 : vector<1x1x256xf32> to vector<1x256xf32>
    %547 = vector.broadcast %111 : f32 to vector<1x256xf32>
    %548 = arith.mulf %547, %546 : vector<1x256xf32>
    %549 = arith.addf %544, %548 : vector<1x256xf32>
    %c14_i32 = arith.constant 14 : i32
    %550 = vector.broadcast %c14_i32 : i32 to vector<1x256xi32>
    %551 = arith.cmpi slt, %6, %550 : vector<1x256xi32>
    %cst_273 = arith.constant 0.000000e+00 : f32
    %552 = vector.broadcast %cst_273 : f32 to vector<1x256xf32>
    %553 = arith.select %551, %549, %552 : vector<1x256xi1>, vector<1x256xf32>
    %554 = arith.addf %480, %553 : vector<1x256xf32>
    %c0_274 = arith.constant 0 : index
    %c0_275 = arith.constant 0 : index
    %c6_276 = arith.constant 6 : index
    %555 = vector.load %arg5[%c0_274, %c0_275, %c6_276] : memref<2x1x358xf32, #tpu.memory_space<vmem>>, vector<1x1x256xf32>
    %556 = vector.shape_cast %555 : vector<1x1x256xf32> to vector<1x256xf32>
    %557 = vector.broadcast %21 : f32 to vector<1x256xf32>
    %558 = arith.mulf %557, %556 : vector<1x256xf32>
    %c0_277 = arith.constant 0 : index
    %c0_278 = arith.constant 0 : index
    %c22_279 = arith.constant 22 : index
    %559 = vector.load %arg5[%c0_277, %c0_278, %c22_279] : memref<2x1x358xf32, #tpu.memory_space<vmem>>, vector<1x1x256xf32>
    %560 = vector.shape_cast %559 : vector<1x1x256xf32> to vector<1x256xf32>
    %561 = vector.broadcast %28 : f32 to vector<1x256xf32>
    %562 = arith.mulf %561, %560 : vector<1x256xf32>
    %563 = arith.addf %558, %562 : vector<1x256xf32>
    %c0_280 = arith.constant 0 : index
    %c0_281 = arith.constant 0 : index
    %c38_282 = arith.constant 38 : index
    %564 = vector.load %arg5[%c0_280, %c0_281, %c38_282] : memref<2x1x358xf32, #tpu.memory_space<vmem>>, vector<1x1x256xf32>
    %565 = vector.shape_cast %564 : vector<1x1x256xf32> to vector<1x256xf32>
    %566 = vector.broadcast %35 : f32 to vector<1x256xf32>
    %567 = arith.mulf %566, %565 : vector<1x256xf32>
    %568 = arith.addf %563, %567 : vector<1x256xf32>
    %c0_283 = arith.constant 0 : index
    %c0_284 = arith.constant 0 : index
    %c54_285 = arith.constant 54 : index
    %569 = vector.load %arg5[%c0_283, %c0_284, %c54_285] : memref<2x1x358xf32, #tpu.memory_space<vmem>>, vector<1x1x256xf32>
    %570 = vector.shape_cast %569 : vector<1x1x256xf32> to vector<1x256xf32>
    %571 = vector.broadcast %42 : f32 to vector<1x256xf32>
    %572 = arith.mulf %571, %570 : vector<1x256xf32>
    %573 = arith.addf %568, %572 : vector<1x256xf32>
    %c0_286 = arith.constant 0 : index
    %c0_287 = arith.constant 0 : index
    %c70_288 = arith.constant 70 : index
    %574 = vector.load %arg5[%c0_286, %c0_287, %c70_288] : memref<2x1x358xf32, #tpu.memory_space<vmem>>, vector<1x1x256xf32>
    %575 = vector.shape_cast %574 : vector<1x1x256xf32> to vector<1x256xf32>
    %576 = vector.broadcast %49 : f32 to vector<1x256xf32>
    %577 = arith.mulf %576, %575 : vector<1x256xf32>
    %578 = arith.addf %573, %577 : vector<1x256xf32>
    %c0_289 = arith.constant 0 : index
    %c0_290 = arith.constant 0 : index
    %c86_291 = arith.constant 86 : index
    %579 = vector.load %arg5[%c0_289, %c0_290, %c86_291] : memref<2x1x358xf32, #tpu.memory_space<vmem>>, vector<1x1x256xf32>
    %580 = vector.shape_cast %579 : vector<1x1x256xf32> to vector<1x256xf32>
    %581 = vector.broadcast %56 : f32 to vector<1x256xf32>
    %582 = arith.mulf %581, %580 : vector<1x256xf32>
    %583 = arith.addf %578, %582 : vector<1x256xf32>
    %c0_292 = arith.constant 0 : index
    %c0_293 = arith.constant 0 : index
    %c102 = arith.constant 102 : index
    %584 = vector.load %arg5[%c0_292, %c0_293, %c102] : memref<2x1x358xf32, #tpu.memory_space<vmem>>, vector<1x1x256xf32>
    %585 = vector.shape_cast %584 : vector<1x1x256xf32> to vector<1x256xf32>
    %586 = vector.broadcast %63 : f32 to vector<1x256xf32>
    %587 = arith.mulf %586, %585 : vector<1x256xf32>
    %588 = arith.addf %583, %587 : vector<1x256xf32>
    %c1_294 = arith.constant 1 : index
    %c0_295 = arith.constant 0 : index
    %c6_296 = arith.constant 6 : index
    %589 = vector.load %arg5[%c1_294, %c0_295, %c6_296] : memref<2x1x358xf32, #tpu.memory_space<vmem>>, vector<1x1x256xf32>
    %590 = vector.shape_cast %589 : vector<1x1x256xf32> to vector<1x256xf32>
    %591 = vector.broadcast %70 : f32 to vector<1x256xf32>
    %592 = arith.mulf %591, %590 : vector<1x256xf32>
    %593 = arith.addf %588, %592 : vector<1x256xf32>
    %c1_297 = arith.constant 1 : index
    %c0_298 = arith.constant 0 : index
    %c22_299 = arith.constant 22 : index
    %594 = vector.load %arg5[%c1_297, %c0_298, %c22_299] : memref<2x1x358xf32, #tpu.memory_space<vmem>>, vector<1x1x256xf32>
    %595 = vector.shape_cast %594 : vector<1x1x256xf32> to vector<1x256xf32>
    %596 = vector.broadcast %77 : f32 to vector<1x256xf32>
    %597 = arith.mulf %596, %595 : vector<1x256xf32>
    %598 = arith.addf %593, %597 : vector<1x256xf32>
    %c1_300 = arith.constant 1 : index
    %c0_301 = arith.constant 0 : index
    %c38_302 = arith.constant 38 : index
    %599 = vector.load %arg5[%c1_300, %c0_301, %c38_302] : memref<2x1x358xf32, #tpu.memory_space<vmem>>, vector<1x1x256xf32>
    %600 = vector.shape_cast %599 : vector<1x1x256xf32> to vector<1x256xf32>
    %601 = vector.broadcast %84 : f32 to vector<1x256xf32>
    %602 = arith.mulf %601, %600 : vector<1x256xf32>
    %603 = arith.addf %598, %602 : vector<1x256xf32>
    %c1_303 = arith.constant 1 : index
    %c0_304 = arith.constant 0 : index
    %c54_305 = arith.constant 54 : index
    %604 = vector.load %arg5[%c1_303, %c0_304, %c54_305] : memref<2x1x358xf32, #tpu.memory_space<vmem>>, vector<1x1x256xf32>
    %605 = vector.shape_cast %604 : vector<1x1x256xf32> to vector<1x256xf32>
    %606 = vector.broadcast %91 : f32 to vector<1x256xf32>
    %607 = arith.mulf %606, %605 : vector<1x256xf32>
    %608 = arith.addf %603, %607 : vector<1x256xf32>
    %c1_306 = arith.constant 1 : index
    %c0_307 = arith.constant 0 : index
    %c70_308 = arith.constant 70 : index
    %609 = vector.load %arg5[%c1_306, %c0_307, %c70_308] : memref<2x1x358xf32, #tpu.memory_space<vmem>>, vector<1x1x256xf32>
    %610 = vector.shape_cast %609 : vector<1x1x256xf32> to vector<1x256xf32>
    %611 = vector.broadcast %98 : f32 to vector<1x256xf32>
    %612 = arith.mulf %611, %610 : vector<1x256xf32>
    %613 = arith.addf %608, %612 : vector<1x256xf32>
    %c1_309 = arith.constant 1 : index
    %c0_310 = arith.constant 0 : index
    %c86_311 = arith.constant 86 : index
    %614 = vector.load %arg5[%c1_309, %c0_310, %c86_311] : memref<2x1x358xf32, #tpu.memory_space<vmem>>, vector<1x1x256xf32>
    %615 = vector.shape_cast %614 : vector<1x1x256xf32> to vector<1x256xf32>
    %616 = vector.broadcast %105 : f32 to vector<1x256xf32>
    %617 = arith.mulf %616, %615 : vector<1x256xf32>
    %618 = arith.addf %613, %617 : vector<1x256xf32>
    %c1_312 = arith.constant 1 : index
    %c0_313 = arith.constant 0 : index
    %c102_314 = arith.constant 102 : index
    %619 = vector.load %arg5[%c1_312, %c0_313, %c102_314] : memref<2x1x358xf32, #tpu.memory_space<vmem>>, vector<1x1x256xf32>
    %620 = vector.shape_cast %619 : vector<1x1x256xf32> to vector<1x256xf32>
    %621 = vector.broadcast %112 : f32 to vector<1x256xf32>
    %622 = arith.mulf %621, %620 : vector<1x256xf32>
    %623 = arith.addf %618, %622 : vector<1x256xf32>
    %c13_i32 = arith.constant 13 : i32
    %624 = vector.broadcast %c13_i32 : i32 to vector<1x256xi32>
    %625 = arith.cmpi slt, %6, %624 : vector<1x256xi32>
    %cst_315 = arith.constant 0.000000e+00 : f32
    %626 = vector.broadcast %cst_315 : f32 to vector<1x256xf32>
    %627 = arith.select %625, %623, %626 : vector<1x256xi1>, vector<1x256xf32>
    %628 = arith.addf %554, %627 : vector<1x256xf32>
    %629 = arith.negf %628 : vector<1x256xf32>
    %630 = math.exp %629 : vector<1x256xf32>
    %cst_316 = arith.constant 1.000000e+00 : f32
    %631 = vector.broadcast %cst_316 : f32 to vector<1x256xf32>
    %632 = arith.addf %631, %630 : vector<1x256xf32>
    %633 = arith.divf %631, %632 : vector<1x256xf32>
    %c0_317 = arith.constant 0 : index
    %c0_318 = arith.constant 0 : index
    %c0_319 = arith.constant 0 : index
    %634 = vector.load %arg3[%c0_317, %c0_318, %c0_319] : memref<1x4x256xf32, #tpu.memory_space<vmem>>, vector<1x4x256xf32>
    %635 = vector.shape_cast %633 : vector<1x256xf32> to vector<1x1x256xf32>
    %636 = vector.broadcast %635 : vector<1x1x256xf32> to vector<1x4x256xf32>
    %637 = arith.mulf %634, %636 : vector<1x4x256xf32>
    %c0_320 = arith.constant 0 : index
    %c0_321 = arith.constant 0 : index
    %c0_322 = arith.constant 0 : index
    %638 = vector.load %arg4[%c0_320, %c0_321, %c0_322] : memref<1x4x256xf32, #tpu.memory_space<vmem>>, vector<1x4x256xf32>
    tpu.vector_store %arg4[%c0_320, %c0_321, %c0_322], %637 {strides = array<i32>} : memref<1x4x256xf32, #tpu.memory_space<vmem>>, vector<1x4x256xf32>,
    return
  }
  func.func @transform_0(%arg0: i32) -> i32 {
    %c0_i32 = arith.constant 0 : i32
    %c0_i32_0 = arith.constant 0 : i32
    return %c0_i32 : i32
  }
  func.func @transform_1(%arg0: i32) -> (i32, i32) {
    %c0_i32 = arith.constant 0 : i32
    %c0_i32_0 = arith.constant 0 : i32
    %c0_i32_1 = arith.constant 0 : i32
    return %c0_i32, %c0_i32_0 : i32, i32
  }
  func.func @transform_2(%arg0: i32) -> (i32, i32, i32) {
    %c0_i32 = arith.constant 0 : i32
    %c0_i32_0 = arith.constant 0 : i32
    %c0_i32_1 = arith.constant 0 : i32
    return %arg0, %c0_i32, %c0_i32_0 : i32, i32, i32
  }
  func.func @transform_3(%arg0: i32) -> (i32, i32, i32) {
    %c0_i32 = arith.constant 0 : i32
    %c0_i32_0 = arith.constant 0 : i32
    %c0_i32_1 = arith.constant 0 : i32
    return %arg0, %c0_i32, %c0_i32_0 : i32, i32, i32
  }
}

</mosaic_0001>

<llo_original>
// kernel: tpu_custom_call.1
$region0: #{tpu_custom_call.1}
  #allocation0 [shape = 'u32[]', space=smem, size = 0x4, offset = 0x4, fixed_abs, tag = 'smem constant byte address 0x4 - core index']
  #allocation1 [shape = 'u32[72,128]{1,0:T(1,128)}', space=vmem, size = 0x9000, scoped, tag = 'internal scratch']
  #allocation2 [shape = 'f32[2,1,358]{2,1,0:T(1,128)}', space=vmem, size = 0xc00, scoped, tag = 'scratch operand']
  %s0 = inlined_call_operand.hbm [shape: f32[99], index: 0, kind: input, shape index: {}]
  %s1 = inlined_call_operand.hbm [shape: s32[1,256], index: 1, kind: input, shape index: {}]
  %s2 = inlined_call_operand.hbm [shape: f32[2,4,256], index: 2, kind: input, shape index: {}]
  %s3 = inlined_call_operand.hbm [shape: f32[2,4,256], index: 3, kind: output, shape index: {}]
  %s4 = sld [smem:[#allocation0]]
  $region57: #{tpu_custom_call.1} parent=0
    _
  %s6 = ssub.s32 1, %s4
  %s7 = scalar_select 0, %s6, %s4
  $region1: #{tpu_custom_call.1} parent=0
    #allocation3 [shape = 'u8[512]{0}', space=smem, size = 0x200, scoped, tag = 'input window, operand 0, single buffered']
    #allocation4 [shape = 's32[2]{0}', space=sflag, size = 0x8, scoped, tag = 'scoped memory for tpu_custom_call.1']
    #allocation5 [shape = 's32[2]{0}', space=sflag, size = 0x8, scoped, tag = 'scoped memory for tpu_custom_call.1']
    #allocation6 [shape = 's32[2]{0}', space=sflag, size = 0x8, scoped, tag = 'scoped memory for tpu_custom_call.1']
    #allocation7 [shape = 'u8[1024]{0}', space=vmem, size = 0x400, scoped, tag = 'input window, operand 1, single buffered']
    #allocation8 [shape = 'u8[8192]{0}', space=vmem, size = 0x2000, scoped, tag = 'input window, operand 2']
    #allocation9 [shape = 's32[2]{0}', space=sflag, size = 0x8, scoped, tag = 'scoped memory for tpu_custom_call.1']
    #allocation10 [shape = 'u8[8192]{0}', space=vmem, size = 0x2000, scoped, tag = 'output window, operand 0']
    %8 = vsyncpa [#allocation6], 0
    %9 = vsyncpa [#allocation4], 0
    %10 = vsyncpa [#allocation9], 0
    %s11 = scalar_lea.sflag [#allocation9], 1
    %12 = vsyncpa %s11, 0
    %13 = vsyncpa [#allocation5], 0
    %s14 = scalar_lea.sflag [#allocation5], 1
    %15 = vsyncpa %s14, 0
    loop: start=0, step=1, limit=4
    $region2: #{tpu_custom_call.1} parent=1 // loop_pre_header
      _
    $region3: #{tpu_custom_call.1} parent=1 // loop_header
      %s17 = sphi 0, %s21
      %p18 = scmp.ge.s32.totalorder %s17, 4
      %s25 = sphi 0, %s25
      %s27 = sphi 0, %s25
      %s28 = sphi 0, %s27
      %s42 = sphi 0, %s28
      %s46 = sphi 0, %s46
      %s48 = sphi 0, %s46
      %s49 = sphi 0, %s48
      %s63 = sphi 0, %s49
      %s69 = sphi 0, %s71
      %s72 = sphi 0, %s69
      %s73 = sphi 0, %s72
      %s89 = sphi 0, %s73
      %s95 = sphi 0, %s97
      %s98 = sphi 0, %s95
      %s99 = sphi 0, %s98
      %s115 = sphi 0, %s99
    $region4: #{tpu_custom_call.1} parent=1 // loop_header_branch
      %20 = sbr.rel (%p18) target = $region8
    $region5: #{tpu_custom_call.1} parent=1 // loop_body
      %s22 = ssub.s32 %s17, 1
      %s23 = ssub.s32 %s17, 2
      %s24 = sadd.s32 %s17, 1
      %s26 = sadd.s32 %s25, 1
      %p29 = scmp.eq.s32.totalorder %s17, 1
      %p30 = scmp.ne.s32.totalorder %s25, %s27
      %p31 = scmp.eq.s32.totalorder %s17, 0
      %p32 = por %p30, %p31
      %p33 = scmp.ne.s32.totalorder %s25, %s27
      %p34 = scmp.eq.s32.totalorder %s22, 1
      %p35 = por %p33, %p34
      %p36 = scmp.ne.s32.totalorder %s27, %s28
      %p37 = scmp.eq.s32.totalorder %s22, 0
      %p38 = por %p36, %p37
      %p39 = scmp.ne.s32.totalorder %s27, %s28
      %p40 = scmp.eq.s32.totalorder %s23, 1
      %p41 = por %p39, %p40
      %p43 = scmp.ne.s32.totalorder %s28, %s42
      %p44 = scmp.eq.s32.totalorder %s23, 0
      %p45 = por %p43, %p44
      %s47 = sadd.s32 %s46, 1
      %p50 = scmp.eq.s32.totalorder %s17, 1
      %p51 = scmp.ne.s32.totalorder %s46, %s48
      %p52 = scmp.eq.s32.totalorder %s17, 0
      %p53 = por %p51, %p52
      %p54 = scmp.ne.s32.totalorder %s46, %s48
      %p55 = scmp.eq.s32.totalorder %s22, 1
      %p56 = por %p54, %p55
      %p57 = scmp.ne.s32.totalorder %s48, %s49
      %p58 = scmp.eq.s32.totalorder %s22, 0
      %p59 = por %p57, %p58
      %p60 = scmp.ne.s32.totalorder %s48, %s49
      %p61 = scmp.eq.s32.totalorder %s23, 1
      %p62 = por %p60, %p61
      %p64 = scmp.ne.s32.totalorder %s49, %s63
      %p65 = scmp.eq.s32.totalorder %s23, 0
      %p66 = por %p64, %p65
      %s67 = ssub.s32 %s17, %s24
      %p68 = scmp.eq.s32.totalorder %s67, 0
      %s70 = sadd.s32 %s69, 1
      %s71 = scalar_select %p68, %s69, %s70
      %p74 = pneg %p68
      %p75 = scmp.eq.s32.totalorder %s17, 1
      %p76 = por %p74, %p75
      %p77 = scmp.ne.s32.totalorder %s69, %s72
      %p78 = scmp.eq.s32.totalorder %s17, 0
      %p79 = por %p77, %p78
      %p80 = scmp.ne.s32.totalorder %s69, %s72
      %p81 = scmp.eq.s32.totalorder %s22, 1
      %p82 = por %p80, %p81
      %p83 = scmp.ne.s32.totalorder %s72, %s73
      %p84 = scmp.eq.s32.totalorder %s22, 0
      %p85 = por %p83, %p84
      %p86 = scmp.ne.s32.totalorder %s72, %s73
      %p87 = scmp.eq.s32.totalorder %s23, 1
      %p88 = por %p86, %p87
      %p90 = scmp.ne.s32.totalorder %s73, %s89
      %p91 = scmp.eq.s32.totalorder %s23, 0
      %p92 = por %p90, %p91
      %s93 = ssub.s32 %s17, %s24
      %p94 = scmp.eq.s32.totalorder %s93, 0
      %s96 = sadd.s32 %s95, 1
      %s97 = scalar_select %p94, %s95, %s96
      %p100 = pneg %p94
      %p101 = scmp.eq.s32.totalorder %s17, 1
      %p102 = por %p100, %p101
      %p103 = scmp.ne.s32.totalorder %s95, %s98
      %p104 = scmp.eq.s32.totalorder %s17, 0
      %p105 = por %p103, %p104
      %p106 = scmp.ne.s32.totalorder %s95, %s98
      %p107 = scmp.eq.s32.totalorder %s22, 1
      %p108 = por %p106, %p107
      %p109 = scmp.ne.s32.totalorder %s98, %s99
      %p110 = scmp.eq.s32.totalorder %s22, 0
      %p111 = por %p109, %p110
      %p112 = scmp.ne.s32.totalorder %s98, %s99
      %p113 = scmp.eq.s32.totalorder %s23, 1
      %p114 = por %p112, %p113
      %p116 = scmp.ne.s32.totalorder %s99, %s115
      %p117 = scmp.eq.s32.totalorder %s23, 0
      %p118 = por %p116, %p117
      %p119 = scmp.le.s32.totalorder 1, %s17
      %p120 = scmp.lt.s32.totalorder %s17, 3
      %p121 = pnand %p119, %p120
      %p122 = pneg %p121
      // Predicated region
      $region9: #{tpu_custom_call.1} parent=5 // pred_check
        _
      $region10: #{tpu_custom_call.1} parent=5 // pred_check_branch
        %124 = sbr.rel (%p121) target = $region12
      $region11: #{tpu_custom_call.1} parent=5 // pred_region
        %s125 = ssub.s32 %s17, 1
        // Predicated region
        $region13: #{tpu_custom_call.1} parent=11 // pred_check
          %p126 = pneg %p38
        $region14: #{tpu_custom_call.1} parent=11 // pred_check_branch
          %128 = sbr.rel (%p126) target = $region16
        $region15: #{tpu_custom_call.1} parent=11 // pred_region
          %130 = vsyncadd [#allocation6], 0
          %s132 = sshll.u32 %s0, 4
          %s133 = int_to_ptr.hbm [resolvable:$true] %s132
          %135 = dma.hbm_to_smem %s133, 16, [#allocation3], [#allocation6]
        $region16: #{tpu_custom_call.1} parent=11 // pred_fallthru
          _
        // Predicated region
        $region17: #{tpu_custom_call.1} parent=11 // pred_check
          %p136 = pneg %p59
        $region18: #{tpu_custom_call.1} parent=11 // pred_check_branch
          %138 = sbr.rel (%p136) target = $region20
        $region19: #{tpu_custom_call.1} parent=11 // pred_region
          %140 = vsyncadd [#allocation4], 0
          %s142 = sshll.u32 %s1, 4
          %s143 = int_to_ptr.hbm [resolvable:$true] %s142
          %s144 = sshll.u32 [#allocation7], 4
          %s145 = int_to_ptr.vmem [resolvable:$true] %s144
          %147 = dma.hbm_to_vmem [thread:$0]  %s143, 32, %s145, [#allocation4]
        $region20: #{tpu_custom_call.1} parent=11 // pred_fallthru
          _
      $region12: #{tpu_custom_call.1} parent=5 // pred_fallthru
        _
      %p148 = scmp.lt.s32.totalorder %s17, 2
      // Predicated region
      $region21: #{tpu_custom_call.1} parent=5 // pred_check
        %p149 = pneg %p148
      $region22: #{tpu_custom_call.1} parent=5 // pred_check_branch
        %151 = sbr.rel (%p149) target = $region24
      $region23: #{tpu_custom_call.1} parent=5 // pred_region
        // Predicated region
        $region25: #{tpu_custom_call.1} parent=23 // pred_check
          %p152 = pneg %p79
        $region26: #{tpu_custom_call.1} parent=23 // pred_check_branch
          %154 = sbr.rel (%p152) target = $region28
        $region27: #{tpu_custom_call.1} parent=23 // pred_region
          %s155 = sand.u32 %s69, 1
          %s156 = scalar_lea.sflag [#allocation9], %s155
          %s157 = sand.u32 %s69, 1
          %s158 = smul.addr %s157, 8
          %s159 = scalar_lea.vmem [#allocation8], %s158
          %161 = vsyncadd %s156, 0
          %s162 = smul.addr %s17, 2
          %s163 = smul.addr %s162, 4
          %s164 = scalar_lea.hbm %s2, %s163
          %s166 = sshll.u32 %s164, 4
          %s167 = int_to_ptr.hbm [resolvable:$true] %s166
          %s168 = sshll.u32 %s159, 4
          %s169 = int_to_ptr.vmem [resolvable:$true] %s168
          %171 = dma.hbm_to_vmem [thread:$0]  %s167, 128, %s169, %s156
        $region28: #{tpu_custom_call.1} parent=23 // pred_fallthru
          _
      $region24: #{tpu_custom_call.1} parent=5 // pred_fallthru
        _
      %p172 = scmp.le.s32.totalorder 1, %s17
      %p173 = scmp.lt.s32.totalorder %s17, 3
      %p174 = pnand %p172, %p173
      %p175 = pneg %p174
      // Predicated region
      $region29: #{tpu_custom_call.1} parent=5 // pred_check
        _
      $region30: #{tpu_custom_call.1} parent=5 // pred_check_branch
        %177 = sbr.rel (%p174) target = $region32
      $region31: #{tpu_custom_call.1} parent=5 // pred_region
        %s178 = ssub.s32 %s17, 1
        // Predicated region
        $region33: #{tpu_custom_call.1} parent=31 // pred_check
          %p179 = pneg %p38
        $region34: #{tpu_custom_call.1} parent=31 // pred_check_branch
          %181 = sbr.rel (%p179) target = $region36
        $region35: #{tpu_custom_call.1} parent=31 // pred_region
          %183 = dma.done [#allocation6], 16
        $region36: #{tpu_custom_call.1} parent=31 // pred_fallthru
          _
        // Predicated region
        $region37: #{tpu_custom_call.1} parent=31 // pred_check
          %p184 = pneg %p59
        $region38: #{tpu_custom_call.1} parent=31 // pred_check_branch
          %186 = sbr.rel (%p184) target = $region40
        $region39: #{tpu_custom_call.1} parent=31 // pred_region
          %188 = dma.done [#allocation4], 32
        $region40: #{tpu_custom_call.1} parent=31 // pred_fallthru
          _
        %s189 = sand.u32 %s72, 1
        %s190 = scalar_lea.sflag [#allocation9], %s189
        %s191 = sand.u32 %s72, 1
        %s192 = smul.addr %s191, 8
        %s193 = scalar_lea.vmem [#allocation8], %s192
        // Predicated region
        $region41: #{tpu_custom_call.1} parent=31 // pred_check
          %p194 = pneg %p85
        $region42: #{tpu_custom_call.1} parent=31 // pred_check_branch
          %196 = sbr.rel (%p194) target = $region44
        $region43: #{tpu_custom_call.1} parent=31 // pred_region
          %198 = dma.done %s190, 128
        $region44: #{tpu_custom_call.1} parent=31 // pred_fallthru
          _
        %199 = sfence
        %p200 = pneg %p38
        %p201 = pneg %p35
        %p202 = pneg %p59
        %p203 = pneg %p56
        %s204 = sand.u32 %s72, 1
        %s205 = scalar_lea.sflag [#allocation9], %s204
        %s206 = sand.u32 %s72, 1
        %s207 = smul.addr %s206, 8
        %s208 = scalar_lea.vmem [#allocation8], %s207
        %p209 = pneg %p85
        %p210 = pneg %p82
        %p211 = pneg %p111
        %p212 = pneg %p108
        %s213 = sand.u32 %s98, 1
        %s214 = scalar_lea.sflag [#allocation5], %s213
        %s215 = sand.u32 %s98, 1
        %s216 = smul.addr %s215, 8
        %s217 = scalar_lea.vmem [#allocation10], %s216
        %v218 = vld [vmem:[%s193] sm:$0xff]
        %220 = vst [vmem:[#allocation1] ss:$2 sm:$0xff] %v218
        %v221 = vld.sshfl [vmem:[#allocation1] sm:$0xff pattern:$0x75316420]
        %v222 = vld.sshfl [vmem:[#allocation1 + $0x8] sm:$0xff pattern:$0x75316420]
        %vm225 = vcmask 1043456
        %v226 = vsel %vm225, %v221, 0.0
        %v227 = vrot.slane %v226, 4
        %v228 = vadd.f32 %v226, %v227
        %v229 = vrot.slane %v228, 2
        %v230 = vadd.f32 %v228, %v229
        %v231 = vrot.slane %v230, 1
        %v232 = vadd.f32 %v230, %v231
        %v233 = vsel %vm225, %v222, 0.0
        %v234 = vrot.slane %v233, 4
        %v235 = vadd.f32 %v233, %v234
        %v236 = vrot.slane %v235, 2
        %v237 = vadd.f32 %v235, %v236
        %v238 = vrot.slane %v237, 1
        %v239 = vadd.f32 %v237, %v238
        %v240 = vmul.f32 %v232, 0.25
        %v241 = vmul.f32 %v239, 0.25
        %242 = vst [vmem:[#allocation1] ss:$2 sm:$0xff] %v218
        %v243 = vld.sshfl [vmem:[#allocation1] sm:$0xff pattern:$0x75316420]
        %v244 = vld.sshfl [vmem:[#allocation1 + $0x8] sm:$0xff pattern:$0x75316420]
        %v247 = vsel %vm225, %v243, -inf
        %v248 = vrot.slane %v247, 4
        %v249 = vmax.f32 %v247, %v248
        %v250 = vrot.slane %v249, 2
        %v251 = vmax.f32 %v249, %v250
        %v252 = vrot.slane %v251, 1
        %v253 = vmax.f32 %v251, %v252
        %v254 = vsel %vm225, %v244, -inf
        %v255 = vrot.slane %v254, 4
        %v256 = vmax.f32 %v254, %v255
        %v257 = vrot.slane %v256, 2
        %v258 = vmax.f32 %v256, %v257
        %v259 = vrot.slane %v258, 1
        %v260 = vmax.f32 %v258, %v259
        %v261 = vld [vmem:[#allocation7] sm:$0x3]
        %v262 = vlaneseq
        %vm263 = vcmp.ge.s32.totalorder %v262, 0
        %vm264 = vcmp.lt.s32.totalorder %v262, 358
        %vm265 = vmand %vm263, %vm264
        %266 = vst.msk [vmem:[#allocation2] sm:$0x7] %vm265, 0.0
        %267 = vst.msk [vmem:[#allocation2 + $0x3] sm:$0x7] %vm265, 0.0
        %v270 = vrot.slane %v241, 7
        %vm271 = vcmask 1040384
        %v272 = vsel %vm271, %v240, %v270
        %273 = vrot.lane.b32.xlu0 %v272, 51
        %v274 = vpop.permute.xlu0 %273
        %v275 = vrot.slane %v274, 7
        %vm276 = vcmask 416768
        %v277 = vsel %vm276, %v275, %v274
        %vm279 = vcmp.ge.s32.totalorder %v262, 51
        %vm280 = vcmp.lt.s32.totalorder %v262, 307
        %vm281 = vmand %vm279, %vm280
        %282 = vst.msk [vmem:[#allocation2] sm:$0x7] %vm281, %v277
        %v285 = vrot.slane %v260, 7
        %v286 = vsel %vm271, %v253, %v285
        %287 = vrot.lane.b32.xlu0 %v286, 51
        %v288 = vpop.permute.xlu0 %287
        %v289 = vrot.slane %v288, 7
        %v290 = vsel %vm276, %v289, %v288
        %s292 = scalar_lea.vmem [#allocation2], 3
        %293 = vst.msk [vmem:[%s292] sm:$0x7] %vm281, %v290
        %s294 = sld [smem:[#allocation3]]
        %s295 = sld [smem:[#allocation3 + $0x1]]
        %s296 = sld [smem:[#allocation3 + $0x2]]
        %s297 = sld [smem:[#allocation3 + $0x3]]
        %s298 = sld [smem:[#allocation3 + $0x4]]
        %s299 = sld [smem:[#allocation3 + $0x5]]
        %s300 = sld [smem:[#allocation3 + $0x6]]
        %s301 = sld [smem:[#allocation3 + $0x7]]
        %s302 = sld [smem:[#allocation3 + $0x8]]
        %s303 = sld [smem:[#allocation3 + $0x9]]
        %s304 = sld [smem:[#allocation3 + $0xa]]
        %s305 = sld [smem:[#allocation3 + $0xb]]
        %s306 = sld [smem:[#allocation3 + $0xc]]
        %s307 = sld [smem:[#allocation3 + $0xd]]
        %s308 = sld [smem:[#allocation3 + $0xe]]
        %s309 = sld [smem:[#allocation3 + $0xf]]
        %s310 = sld [smem:[#allocation3 + $0x10]]
        %s311 = sld [smem:[#allocation3 + $0x11]]
        %s312 = sld [smem:[#allocation3 + $0x12]]
        %s313 = sld [smem:[#allocation3 + $0x13]]
        %s314 = sld [smem:[#allocation3 + $0x14]]
        %s315 = sld [smem:[#allocation3 + $0x15]]
        %s316 = sld [smem:[#allocation3 + $0x16]]
        %s317 = sld [smem:[#allocation3 + $0x17]]
        %s318 = sld [smem:[#allocation3 + $0x18]]
        %s319 = sld [smem:[#allocation3 + $0x19]]
        %s320 = sld [smem:[#allocation3 + $0x1a]]
        %s321 = sld [smem:[#allocation3 + $0x1b]]
        %s322 = sld [smem:[#allocation3 + $0x1c]]
        %s323 = sld [smem:[#allocation3 + $0x1d]]
        %s324 = sld [smem:[#allocation3 + $0x1e]]
        %s325 = sld [smem:[#allocation3 + $0x1f]]
        %s326 = sld [smem:[#allocation3 + $0x20]]
        %s327 = sld [smem:[#allocation3 + $0x21]]
        %s328 = sld [smem:[#allocation3 + $0x22]]
        %s329 = sld [smem:[#allocation3 + $0x23]]
        %s330 = sld [smem:[#allocation3 + $0x24]]
        %s331 = sld [smem:[#allocation3 + $0x25]]
        %s332 = sld [smem:[#allocation3 + $0x26]]
        %s333 = sld [smem:[#allocation3 + $0x27]]
        %s334 = sld [smem:[#allocation3 + $0x28]]
        %s335 = sld [smem:[#allocation3 + $0x29]]
        %s336 = sld [smem:[#allocation3 + $0x2a]]
        %s337 = sld [smem:[#allocation3 + $0x2b]]
        %s338 = sld [smem:[#allocation3 + $0x2c]]
        %s339 = sld [smem:[#allocation3 + $0x2d]]
        %s340 = sld [smem:[#allocation3 + $0x2e]]
        %s341 = sld [smem:[#allocation3 + $0x2f]]
        %s342 = sld [smem:[#allocation3 + $0x30]]
        %s343 = sld [smem:[#allocation3 + $0x31]]
        %s344 = sld [smem:[#allocation3 + $0x32]]
        %s345 = sld [smem:[#allocation3 + $0x33]]
        %s346 = sld [smem:[#allocation3 + $0x34]]
        %s347 = sld [smem:[#allocation3 + $0x35]]
        %s348 = sld [smem:[#allocation3 + $0x36]]
        %s349 = sld [smem:[#allocation3 + $0x37]]
        %s350 = sld [smem:[#allocation3 + $0x38]]
        %s351 = sld [smem:[#allocation3 + $0x39]]
        %s352 = sld [smem:[#allocation3 + $0x3a]]
        %s353 = sld [smem:[#allocation3 + $0x3b]]
        %s354 = sld [smem:[#allocation3 + $0x3c]]
        %s355 = sld [smem:[#allocation3 + $0x3d]]
        %s356 = sld [smem:[#allocation3 + $0x3e]]
        %s357 = sld [smem:[#allocation3 + $0x3f]]
        %s358 = sld [smem:[#allocation3 + $0x40]]
        %s359 = sld [smem:[#allocation3 + $0x41]]
        %s360 = sld [smem:[#allocation3 + $0x42]]
        %s361 = sld [smem:[#allocation3 + $0x43]]
        %s362 = sld [smem:[#allocation3 + $0x44]]
        %s363 = sld [smem:[#allocation3 + $0x45]]
        %s364 = sld [smem:[#allocation3 + $0x46]]
        %s365 = sld [smem:[#allocation3 + $0x47]]
        %s366 = sld [smem:[#allocation3 + $0x48]]
        %s367 = sld [smem:[#allocation3 + $0x49]]
        %s368 = sld [smem:[#allocation3 + $0x4a]]
        %s369 = sld [smem:[#allocation3 + $0x4b]]
        %s370 = sld [smem:[#allocation3 + $0x4c]]
        %s371 = sld [smem:[#allocation3 + $0x4d]]
        %s372 = sld [smem:[#allocation3 + $0x4e]]
        %s373 = sld [smem:[#allocation3 + $0x4f]]
        %s374 = sld [smem:[#allocation3 + $0x50]]
        %s375 = sld [smem:[#allocation3 + $0x51]]
        %s376 = sld [smem:[#allocation3 + $0x52]]
        %s377 = sld [smem:[#allocation3 + $0x53]]
        %s378 = sld [smem:[#allocation3 + $0x54]]
        %s379 = sld [smem:[#allocation3 + $0x55]]
        %s380 = sld [smem:[#allocation3 + $0x56]]
        %s381 = sld [smem:[#allocation3 + $0x57]]
        %s382 = sld [smem:[#allocation3 + $0x58]]
        %s383 = sld [smem:[#allocation3 + $0x59]]
        %s384 = sld [smem:[#allocation3 + $0x5a]]
        %s385 = sld [smem:[#allocation3 + $0x5b]]
        %s386 = sld [smem:[#allocation3 + $0x5c]]
        %s387 = sld [smem:[#allocation3 + $0x5d]]
        %s388 = sld [smem:[#allocation3 + $0x5e]]
        %s389 = sld [smem:[#allocation3 + $0x5f]]
        %s390 = sld [smem:[#allocation3 + $0x60]]
        %s391 = sld [smem:[#allocation3 + $0x61]]
        %s392 = sld [smem:[#allocation3 + $0x62]]
        %v393 = vstv %s392
        %v394 = vld [vmem:[#allocation2] sm:$0x3]
        %v395 = vstv %s294
        %v396 = vmul.f32 %v395, %v394
        %v397 = vld [vmem:[#allocation2] sm:$0x7]
        %v398 = vstv %s301
        %v399 = vmul.f32 %v398, %v397
        %401 = vrot.lane.b32.xlu0 %v399, 112
        %v402 = vpop.permute.xlu0 %401
        %v403 = vrot.slane %v402, 1
        %vm404 = vcmask 916480
        %v405 = vsel %vm404, %v402, %v403
        %v407 = vadd.f32 %v396, %v405
        %v408 = vstv %s308
        %v409 = vmul.f32 %v408, %v397
        %411 = vrot.lane.b32.xlu0 %v409, 96
        %v412 = vpop.permute.xlu0 %411
        %v413 = vrot.slane %v412, 1
        %vm414 = vcmask 785408
        %v415 = vsel %vm414, %v412, %v413
        %v417 = vadd.f32 %v407, %v415
        %v418 = vstv %s315
        %v419 = vmul.f32 %v418, %v397
        %421 = vrot.lane.b32.xlu0 %v419, 80
        %v422 = vpop.permute.xlu0 %421
        %v423 = vrot.slane %v422, 1
        %vm424 = vcmask 654336
        %v425 = vsel %vm424, %v422, %v423
        %v427 = vadd.f32 %v417, %v425
        %v428 = vstv %s322
        %v429 = vmul.f32 %v428, %v397
        %431 = vrot.lane.b32.xlu0 %v429, 64
        %v432 = vpop.permute.xlu0 %431
        %v433 = vrot.slane %v432, 1
        %vm434 = vcmask 523264
        %v435 = vsel %vm434, %v432, %v433
        %v437 = vadd.f32 %v427, %v435
        %v438 = vstv %s329
        %v439 = vmul.f32 %v438, %v397
        %441 = vrot.lane.b32.xlu0 %v439, 48
        %v442 = vpop.permute.xlu0 %441
        %v443 = vrot.slane %v442, 1
        %vm444 = vcmask 392192
        %v445 = vsel %vm444, %v442, %v443
        %v447 = vadd.f32 %v437, %v445
        %v448 = vstv %s336
        %v449 = vmul.f32 %v448, %v397
        %451 = vrot.lane.b32.xlu0 %v449, 32
        %v452 = vpop.permute.xlu0 %451
        %v453 = vrot.slane %v452, 1
        %vm454 = vcmask 261120
        %v455 = vsel %vm454, %v452, %v453
        %v457 = vadd.f32 %v447, %v455
        %v458 = vld [vmem:[%s292] sm:$0x3]
        %v459 = vstv %s343
        %v460 = vmul.f32 %v459, %v458
        %v461 = vadd.f32 %v457, %v460
        %v462 = vld [vmem:[%s292] sm:$0x7]
        %v463 = vstv %s350
        %v464 = vmul.f32 %v463, %v462
        %466 = vrot.lane.b32.xlu0 %v464, 112
        %v467 = vpop.permute.xlu0 %466
        %v468 = vrot.slane %v467, 1
        %v469 = vsel %vm404, %v467, %v468
        %v471 = vadd.f32 %v461, %v469
        %v472 = vstv %s357
        %v473 = vmul.f32 %v472, %v462
        %475 = vrot.lane.b32.xlu0 %v473, 96
        %v476 = vpop.permute.xlu0 %475
        %v477 = vrot.slane %v476, 1
        %v478 = vsel %vm414, %v476, %v477
        %v480 = vadd.f32 %v471, %v478
        %v481 = vstv %s364
        %v482 = vmul.f32 %v481, %v462
        %484 = vrot.lane.b32.xlu0 %v482, 80
        %v485 = vpop.permute.xlu0 %484
        %v486 = vrot.slane %v485, 1
        %v487 = vsel %vm424, %v485, %v486
        %v489 = vadd.f32 %v480, %v487
        %v490 = vstv %s371
        %v491 = vmul.f32 %v490, %v462
        %493 = vrot.lane.b32.xlu0 %v491, 64
        %v494 = vpop.permute.xlu0 %493
        %v495 = vrot.slane %v494, 1
        %v496 = vsel %vm434, %v494, %v495
        %v498 = vadd.f32 %v489, %v496
        %v499 = vstv %s378
        %v500 = vmul.f32 %v499, %v462
        %502 = vrot.lane.b32.xlu0 %v500, 48
        %v503 = vpop.permute.xlu0 %502
        %v504 = vrot.slane %v503, 1
        %v505 = vsel %vm444, %v503, %v504
        %v507 = vadd.f32 %v498, %v505
        %v508 = vstv %s385
        %v509 = vmul.f32 %v508, %v462
        %511 = vrot.lane.b32.xlu0 %v509, 32
        %v512 = vpop.permute.xlu0 %511
        %v513 = vrot.slane %v512, 1
        %v514 = vsel %vm454, %v512, %v513
        %v516 = vadd.f32 %v507, %v514
        %vm517 = vcmp.ge.s32.totalorder %v261, 3
        %v518 = vsel %vm517, %v516, 0.0
        %v519 = vadd.f32 %v393, %v518
        %v520 = vstv %s295
        %v521 = vmul.f32 %v520, %v397
        %v522 = vstv %s302
        %v523 = vmul.f32 %v522, %v397
        %525 = vrot.lane.b32.xlu0 %v523, 112
        %v526 = vpop.permute.xlu0 %525
        %v527 = vrot.slane %v526, 1
        %v528 = vsel %vm404, %v526, %v527
        %v530 = vadd.f32 %v521, %v528
        %v531 = vstv %s309
        %v532 = vmul.f32 %v531, %v397
        %534 = vrot.lane.b32.xlu0 %v532, 96
        %v535 = vpop.permute.xlu0 %534
        %v536 = vrot.slane %v535, 1
        %v537 = vsel %vm414, %v535, %v536
        %v539 = vadd.f32 %v530, %v537
        %v540 = vstv %s316
        %v541 = vmul.f32 %v540, %v397
        %543 = vrot.lane.b32.xlu0 %v541, 80
        %v544 = vpop.permute.xlu0 %543
        %v545 = vrot.slane %v544, 1
        %v546 = vsel %vm424, %v544, %v545
        %v548 = vadd.f32 %v539, %v546
        %v549 = vstv %s323
        %v550 = vmul.f32 %v549, %v397
        %552 = vrot.lane.b32.xlu0 %v550, 64
        %v553 = vpop.permute.xlu0 %552
        %v554 = vrot.slane %v553, 1
        %v555 = vsel %vm434, %v553, %v554
        %v557 = vadd.f32 %v548, %v555
        %v558 = vstv %s330
        %v559 = vmul.f32 %v558, %v397
        %561 = vrot.lane.b32.xlu0 %v559, 48
        %v562 = vpop.permute.xlu0 %561
        %v563 = vrot.slane %v562, 1
        %v564 = vsel %vm444, %v562, %v563
        %v566 = vadd.f32 %v557, %v564
        %v567 = vstv %s337
        %v568 = vmul.f32 %v567, %v397
        %570 = vrot.lane.b32.xlu0 %v568, 32
        %v571 = vpop.permute.xlu0 %570
        %v572 = vrot.slane %v571, 1
        %v573 = vsel %vm454, %v571, %v572
        %v575 = vadd.f32 %v566, %v573
        %v576 = vstv %s344
        %v577 = vmul.f32 %v576, %v462
        %v578 = vadd.f32 %v575, %v577
        %v579 = vstv %s351
        %v580 = vmul.f32 %v579, %v462
        %582 = vrot.lane.b32.xlu0 %v580, 112
        %v583 = vpop.permute.xlu0 %582
        %v584 = vrot.slane %v583, 1
        %v585 = vsel %vm404, %v583, %v584
        %v587 = vadd.f32 %v578, %v585
        %v588 = vstv %s358
        %v589 = vmul.f32 %v588, %v462
        %591 = vrot.lane.b32.xlu0 %v589, 96
        %v592 = vpop.permute.xlu0 %591
        %v593 = vrot.slane %v592, 1
        %v594 = vsel %vm414, %v592, %v593
        %v596 = vadd.f32 %v587, %v594
        %v597 = vstv %s365
        %v598 = vmul.f32 %v597, %v462
        %600 = vrot.lane.b32.xlu0 %v598, 80
        %v601 = vpop.permute.xlu0 %600
        %v602 = vrot.slane %v601, 1
        %v603 = vsel %vm424, %v601, %v602
        %v605 = vadd.f32 %v596, %v603
        %v606 = vstv %s372
        %v607 = vmul.f32 %v606, %v462
        %609 = vrot.lane.b32.xlu0 %v607, 64
        %v610 = vpop.permute.xlu0 %609
        %v611 = vrot.slane %v610, 1
        %v612 = vsel %vm434, %v610, %v611
        %v614 = vadd.f32 %v605, %v612
        %v615 = vstv %s379
        %v616 = vmul.f32 %v615, %v462
        %618 = vrot.lane.b32.xlu0 %v616, 48
        %v619 = vpop.permute.xlu0 %618
        %v620 = vrot.slane %v619, 1
        %v621 = vsel %vm444, %v619, %v620
        %v623 = vadd.f32 %v614, %v621
        %v624 = vstv %s386
        %v625 = vmul.f32 %v624, %v462
        %627 = vrot.lane.b32.xlu0 %v625, 32
        %v628 = vpop.permute.xlu0 %627
        %v629 = vrot.slane %v628, 1
        %v630 = vsel %vm454, %v628, %v629
        %v632 = vadd.f32 %v623, %v630
        %vm633 = vcmp.ge.s32.totalorder %v261, 2
        %635 = vrot.lane.b32.xlu0 %v632, 127
        %v636 = vpop.permute.xlu0 %635
        %v637 = vrot.slane %v636, 1
        %vm638 = vcmask 1039360
        %v639 = vsel %vm638, %v636, %v637
        %v641 = vsel %vm633, %v639, 0.0
        %v642 = vadd.f32 %v519, %v641
        %v643 = vstv %s296
        %v644 = vmul.f32 %v643, %v397
        %v645 = vstv %s303
        %v646 = vmul.f32 %v645, %v397
        %648 = vrot.lane.b32.xlu0 %v646, 112
        %v649 = vpop.permute.xlu0 %648
        %v650 = vrot.slane %v649, 1
        %v651 = vsel %vm404, %v649, %v650
        %v653 = vadd.f32 %v644, %v651
        %v654 = vstv %s310
        %v655 = vmul.f32 %v654, %v397
        %657 = vrot.lane.b32.xlu0 %v655, 96
        %v658 = vpop.permute.xlu0 %657
        %v659 = vrot.slane %v658, 1
        %v660 = vsel %vm414, %v658, %v659
        %v662 = vadd.f32 %v653, %v660
        %v663 = vstv %s317
        %v664 = vmul.f32 %v663, %v397
        %666 = vrot.lane.b32.xlu0 %v664, 80
        %v667 = vpop.permute.xlu0 %666
        %v668 = vrot.slane %v667, 1
        %v669 = vsel %vm424, %v667, %v668
        %v671 = vadd.f32 %v662, %v669
        %v672 = vstv %s324
        %v673 = vmul.f32 %v672, %v397
        %675 = vrot.lane.b32.xlu0 %v673, 64
        %v676 = vpop.permute.xlu0 %675
        %v677 = vrot.slane %v676, 1
        %v678 = vsel %vm434, %v676, %v677
        %v680 = vadd.f32 %v671, %v678
        %v681 = vstv %s331
        %v682 = vmul.f32 %v681, %v397
        %684 = vrot.lane.b32.xlu0 %v682, 48
        %v685 = vpop.permute.xlu0 %684
        %v686 = vrot.slane %v685, 1
        %v687 = vsel %vm444, %v685, %v686
        %v689 = vadd.f32 %v680, %v687
        %v690 = vstv %s338
        %v691 = vmul.f32 %v690, %v397
        %693 = vrot.lane.b32.xlu0 %v691, 32
        %v694 = vpop.permute.xlu0 %693
        %v695 = vrot.slane %v694, 1
        %v696 = vsel %vm454, %v694, %v695
        %v698 = vadd.f32 %v689, %v696
        %v699 = vstv %s345
        %v700 = vmul.f32 %v699, %v462
        %v701 = vadd.f32 %v698, %v700
        %v702 = vstv %s352
        %v703 = vmul.f32 %v702, %v462
        %705 = vrot.lane.b32.xlu0 %v703, 112
        %v706 = vpop.permute.xlu0 %705
        %v707 = vrot.slane %v706, 1
        %v708 = vsel %vm404, %v706, %v707
        %v710 = vadd.f32 %v701, %v708
        %v711 = vstv %s359
        %v712 = vmul.f32 %v711, %v462
        %714 = vrot.lane.b32.xlu0 %v712, 96
        %v715 = vpop.permute.xlu0 %714
        %v716 = vrot.slane %v715, 1
        %v717 = vsel %vm414, %v715, %v716
        %v719 = vadd.f32 %v710, %v717
        %v720 = vstv %s366
        %v721 = vmul.f32 %v720, %v462
        %723 = vrot.lane.b32.xlu0 %v721, 80
        %v724 = vpop.permute.xlu0 %723
        %v725 = vrot.slane %v724, 1
        %v726 = vsel %vm424, %v724, %v725
        %v728 = vadd.f32 %v719, %v726
        %v729 = vstv %s373
        %v730 = vmul.f32 %v729, %v462
        %732 = vrot.lane.b32.xlu0 %v730, 64
        %v733 = vpop.permute.xlu0 %732
        %v734 = vrot.slane %v733, 1
        %v735 = vsel %vm434, %v733, %v734
        %v737 = vadd.f32 %v728, %v735
        %v738 = vstv %s380
        %v739 = vmul.f32 %v738, %v462
        %741 = vrot.lane.b32.xlu0 %v739, 48
        %v742 = vpop.permute.xlu0 %741
        %v743 = vrot.slane %v742, 1
        %v744 = vsel %vm444, %v742, %v743
        %v746 = vadd.f32 %v737, %v744
        %v747 = vstv %s387
        %v748 = vmul.f32 %v747, %v462
        %750 = vrot.lane.b32.xlu0 %v748, 32
        %v751 = vpop.permute.xlu0 %750
        %v752 = vrot.slane %v751, 1
        %v753 = vsel %vm454, %v751, %v752
        %v755 = vadd.f32 %v746, %v753
        %vm756 = vcmp.ge.s32.totalorder %v261, 1
        %758 = vrot.lane.b32.xlu0 %v755, 126
        %v759 = vpop.permute.xlu0 %758
        %v760 = vrot.slane %v759, 1
        %vm761 = vcmask 1031168
        %v762 = vsel %vm761, %v759, %v760
        %v764 = vsel %vm756, %v762, 0.0
        %v765 = vadd.f32 %v642, %v764
        %v766 = vstv %s297
        %v767 = vmul.f32 %v766, %v397
        %v768 = vstv %s304
        %v769 = vmul.f32 %v768, %v397
        %771 = vrot.lane.b32.xlu0 %v769, 112
        %v772 = vpop.permute.xlu0 %771
        %v773 = vrot.slane %v772, 1
        %v774 = vsel %vm404, %v772, %v773
        %v776 = vadd.f32 %v767, %v774
        %v777 = vstv %s311
        %v778 = vmul.f32 %v777, %v397
        %780 = vrot.lane.b32.xlu0 %v778, 96
        %v781 = vpop.permute.xlu0 %780
        %v782 = vrot.slane %v781, 1
        %v783 = vsel %vm414, %v781, %v782
        %v785 = vadd.f32 %v776, %v783
        %v786 = vstv %s318
        %v787 = vmul.f32 %v786, %v397
        %789 = vrot.lane.b32.xlu0 %v787, 80
        %v790 = vpop.permute.xlu0 %789
        %v791 = vrot.slane %v790, 1
        %v792 = vsel %vm424, %v790, %v791
        %v794 = vadd.f32 %v785, %v792
        %v795 = vstv %s325
        %v796 = vmul.f32 %v795, %v397
        %798 = vrot.lane.b32.xlu0 %v796, 64
        %v799 = vpop.permute.xlu0 %798
        %v800 = vrot.slane %v799, 1
        %v801 = vsel %vm434, %v799, %v800
        %v803 = vadd.f32 %v794, %v801
        %v804 = vstv %s332
        %v805 = vmul.f32 %v804, %v397
        %807 = vrot.lane.b32.xlu0 %v805, 48
        %v808 = vpop.permute.xlu0 %807
        %v809 = vrot.slane %v808, 1
        %v810 = vsel %vm444, %v808, %v809
        %v812 = vadd.f32 %v803, %v810
        %v813 = vstv %s339
        %v814 = vmul.f32 %v813, %v397
        %816 = vrot.lane.b32.xlu0 %v814, 32
        %v817 = vpop.permute.xlu0 %816
        %v818 = vrot.slane %v817, 1
        %v819 = vsel %vm454, %v817, %v818
        %v821 = vadd.f32 %v812, %v819
        %v822 = vstv %s346
        %v823 = vmul.f32 %v822, %v462
        %v824 = vadd.f32 %v821, %v823
        %v825 = vstv %s353
        %v826 = vmul.f32 %v825, %v462
        %828 = vrot.lane.b32.xlu0 %v826, 112
        %v829 = vpop.permute.xlu0 %828
        %v830 = vrot.slane %v829, 1
        %v831 = vsel %vm404, %v829, %v830
        %v833 = vadd.f32 %v824, %v831
        %v834 = vstv %s360
        %v835 = vmul.f32 %v834, %v462
        %837 = vrot.lane.b32.xlu0 %v835, 96
        %v838 = vpop.permute.xlu0 %837
        %v839 = vrot.slane %v838, 1
        %v840 = vsel %vm414, %v838, %v839
        %v842 = vadd.f32 %v833, %v840
        %v843 = vstv %s367
        %v844 = vmul.f32 %v843, %v462
        %846 = vrot.lane.b32.xlu0 %v844, 80
        %v847 = vpop.permute.xlu0 %846
        %v848 = vrot.slane %v847, 1
        %v849 = vsel %vm424, %v847, %v848
        %v851 = vadd.f32 %v842, %v849
        %v852 = vstv %s374
        %v853 = vmul.f32 %v852, %v462
        %855 = vrot.lane.b32.xlu0 %v853, 64
        %v856 = vpop.permute.xlu0 %855
        %v857 = vrot.slane %v856, 1
        %v858 = vsel %vm434, %v856, %v857
        %v860 = vadd.f32 %v851, %v858
        %v861 = vstv %s381
        %v862 = vmul.f32 %v861, %v462
        %864 = vrot.lane.b32.xlu0 %v862, 48
        %v865 = vpop.permute.xlu0 %864
        %v866 = vrot.slane %v865, 1
        %v867 = vsel %vm444, %v865, %v866
        %v869 = vadd.f32 %v860, %v867
        %v870 = vstv %s388
        %v871 = vmul.f32 %v870, %v462
        %873 = vrot.lane.b32.xlu0 %v871, 32
        %v874 = vpop.permute.xlu0 %873
        %v875 = vrot.slane %v874, 1
        %v876 = vsel %vm454, %v874, %v875
        %v878 = vadd.f32 %v869, %v876
        %880 = vrot.lane.b32.xlu0 %v878, 125
        %v881 = vpop.permute.xlu0 %880
        %v882 = vrot.slane %v881, 1
        %vm883 = vcmask 1022976
        %v884 = vsel %vm883, %v881, %v882
        %v886 = vadd.f32 %v765, %v884
        %v887 = vstv %s298
        %v888 = vmul.f32 %v887, %v397
        %v889 = vstv %s305
        %v890 = vmul.f32 %v889, %v397
        %892 = vrot.lane.b32.xlu0 %v890, 112
        %v893 = vpop.permute.xlu0 %892
        %v894 = vrot.slane %v893, 1
        %v895 = vsel %vm404, %v893, %v894
        %v897 = vadd.f32 %v888, %v895
        %v898 = vstv %s312
        %v899 = vmul.f32 %v898, %v397
        %901 = vrot.lane.b32.xlu0 %v899, 96
        %v902 = vpop.permute.xlu0 %901
        %v903 = vrot.slane %v902, 1
        %v904 = vsel %vm414, %v902, %v903
        %v906 = vadd.f32 %v897, %v904
        %v907 = vstv %s319
        %v908 = vmul.f32 %v907, %v397
        %910 = vrot.lane.b32.xlu0 %v908, 80
        %v911 = vpop.permute.xlu0 %910
        %v912 = vrot.slane %v911, 1
        %v913 = vsel %vm424, %v911, %v912
        %v915 = vadd.f32 %v906, %v913
        %v916 = vstv %s326
        %v917 = vmul.f32 %v916, %v397
        %919 = vrot.lane.b32.xlu0 %v917, 64
        %v920 = vpop.permute.xlu0 %919
        %v921 = vrot.slane %v920, 1
        %v922 = vsel %vm434, %v920, %v921
        %v924 = vadd.f32 %v915, %v922
        %v925 = vstv %s333
        %v926 = vmul.f32 %v925, %v397
        %928 = vrot.lane.b32.xlu0 %v926, 48
        %v929 = vpop.permute.xlu0 %928
        %v930 = vrot.slane %v929, 1
        %v931 = vsel %vm444, %v929, %v930
        %v933 = vadd.f32 %v924, %v931
        %v934 = vstv %s340
        %v935 = vmul.f32 %v934, %v397
        %937 = vrot.lane.b32.xlu0 %v935, 32
        %v938 = vpop.permute.xlu0 %937
        %v939 = vrot.slane %v938, 1
        %v940 = vsel %vm454, %v938, %v939
        %v942 = vadd.f32 %v933, %v940
        %v943 = vstv %s347
        %v944 = vmul.f32 %v943, %v462
        %v945 = vadd.f32 %v942, %v944
        %v946 = vstv %s354
        %v947 = vmul.f32 %v946, %v462
        %949 = vrot.lane.b32.xlu0 %v947, 112
        %v950 = vpop.permute.xlu0 %949
        %v951 = vrot.slane %v950, 1
        %v952 = vsel %vm404, %v950, %v951
        %v954 = vadd.f32 %v945, %v952
        %v955 = vstv %s361
        %v956 = vmul.f32 %v955, %v462
        %958 = vrot.lane.b32.xlu0 %v956, 96
        %v959 = vpop.permute.xlu0 %958
        %v960 = vrot.slane %v959, 1
        %v961 = vsel %vm414, %v959, %v960
        %v963 = vadd.f32 %v954, %v961
        %v964 = vstv %s368
        %v965 = vmul.f32 %v964, %v462
        %967 = vrot.lane.b32.xlu0 %v965, 80
        %v968 = vpop.permute.xlu0 %967
        %v969 = vrot.slane %v968, 1
        %v970 = vsel %vm424, %v968, %v969
        %v972 = vadd.f32 %v963, %v970
        %v973 = vstv %s375
        %v974 = vmul.f32 %v973, %v462
        %976 = vrot.lane.b32.xlu0 %v974, 64
        %v977 = vpop.permute.xlu0 %976
        %v978 = vrot.slane %v977, 1
        %v979 = vsel %vm434, %v977, %v978
        %v981 = vadd.f32 %v972, %v979
        %v982 = vstv %s382
        %v983 = vmul.f32 %v982, %v462
        %985 = vrot.lane.b32.xlu0 %v983, 48
        %v986 = vpop.permute.xlu0 %985
        %v987 = vrot.slane %v986, 1
        %v988 = vsel %vm444, %v986, %v987
        %v990 = vadd.f32 %v981, %v988
        %v991 = vstv %s389
        %v992 = vmul.f32 %v991, %v462
        %994 = vrot.lane.b32.xlu0 %v992, 32
        %v995 = vpop.permute.xlu0 %994
        %v996 = vrot.slane %v995, 1
        %v997 = vsel %vm454, %v995, %v996
        %v999 = vadd.f32 %v990, %v997
        %vm1000 = vcmp.lt.s32.totalorder %v261, 15
        %1002 = vrot.lane.b32.xlu0 %v999, 124
        %v1003 = vpop.permute.xlu0 %1002
        %v1004 = vrot.slane %v1003, 1
        %vm1005 = vcmask 1014784
        %v1006 = vsel %vm1005, %v1003, %v1004
        %v1008 = vsel %vm1000, %v1006, 0.0
        %v1009 = vadd.f32 %v886, %v1008
        %v1010 = vstv %s299
        %v1011 = vmul.f32 %v1010, %v397
        %v1012 = vstv %s306
        %v1013 = vmul.f32 %v1012, %v397
        %1015 = vrot.lane.b32.xlu0 %v1013, 112
        %v1016 = vpop.permute.xlu0 %1015
        %v1017 = vrot.slane %v1016, 1
        %v1018 = vsel %vm404, %v1016, %v1017
        %v1020 = vadd.f32 %v1011, %v1018
        %v1021 = vstv %s313
        %v1022 = vmul.f32 %v1021, %v397
        %1024 = vrot.lane.b32.xlu0 %v1022, 96
        %v1025 = vpop.permute.xlu0 %1024
        %v1026 = vrot.slane %v1025, 1
        %v1027 = vsel %vm414, %v1025, %v1026
        %v1029 = vadd.f32 %v1020, %v1027
        %v1030 = vstv %s320
        %v1031 = vmul.f32 %v1030, %v397
        %1033 = vrot.lane.b32.xlu0 %v1031, 80
        %v1034 = vpop.permute.xlu0 %1033
        %v1035 = vrot.slane %v1034, 1
        %v1036 = vsel %vm424, %v1034, %v1035
        %v1038 = vadd.f32 %v1029, %v1036
        %v1039 = vstv %s327
        %v1040 = vmul.f32 %v1039, %v397
        %1042 = vrot.lane.b32.xlu0 %v1040, 64
        %v1043 = vpop.permute.xlu0 %1042
        %v1044 = vrot.slane %v1043, 1
        %v1045 = vsel %vm434, %v1043, %v1044
        %v1047 = vadd.f32 %v1038, %v1045
        %v1048 = vstv %s334
        %v1049 = vmul.f32 %v1048, %v397
        %1051 = vrot.lane.b32.xlu0 %v1049, 48
        %v1052 = vpop.permute.xlu0 %1051
        %v1053 = vrot.slane %v1052, 1
        %v1054 = vsel %vm444, %v1052, %v1053
        %v1056 = vadd.f32 %v1047, %v1054
        %v1057 = vstv %s341
        %v1058 = vmul.f32 %v1057, %v397
        %1060 = vrot.lane.b32.xlu0 %v1058, 32
        %v1061 = vpop.permute.xlu0 %1060
        %v1062 = vrot.slane %v1061, 1
        %v1063 = vsel %vm454, %v1061, %v1062
        %v1065 = vadd.f32 %v1056, %v1063
        %v1066 = vstv %s348
        %v1067 = vmul.f32 %v1066, %v462
        %v1068 = vadd.f32 %v1065, %v1067
        %v1069 = vstv %s355
        %v1070 = vmul.f32 %v1069, %v462
        %1072 = vrot.lane.b32.xlu0 %v1070, 112
        %v1073 = vpop.permute.xlu0 %1072
        %v1074 = vrot.slane %v1073, 1
        %v1075 = vsel %vm404, %v1073, %v1074
        %v1077 = vadd.f32 %v1068, %v1075
        %v1078 = vstv %s362
        %v1079 = vmul.f32 %v1078, %v462
        %1081 = vrot.lane.b32.xlu0 %v1079, 96
        %v1082 = vpop.permute.xlu0 %1081
        %v1083 = vrot.slane %v1082, 1
        %v1084 = vsel %vm414, %v1082, %v1083
        %v1086 = vadd.f32 %v1077, %v1084
        %v1087 = vstv %s369
        %v1088 = vmul.f32 %v1087, %v462
        %1090 = vrot.lane.b32.xlu0 %v1088, 80
        %v1091 = vpop.permute.xlu0 %1090
        %v1092 = vrot.slane %v1091, 1
        %v1093 = vsel %vm424, %v1091, %v1092
        %v1095 = vadd.f32 %v1086, %v1093
        %v1096 = vstv %s376
        %v1097 = vmul.f32 %v1096, %v462
        %1099 = vrot.lane.b32.xlu0 %v1097, 64
        %v1100 = vpop.permute.xlu0 %1099
        %v1101 = vrot.slane %v1100, 1
        %v1102 = vsel %vm434, %v1100, %v1101
        %v1104 = vadd.f32 %v1095, %v1102
        %v1105 = vstv %s383
        %v1106 = vmul.f32 %v1105, %v462
        %1108 = vrot.lane.b32.xlu0 %v1106, 48
        %v1109 = vpop.permute.xlu0 %1108
        %v1110 = vrot.slane %v1109, 1
        %v1111 = vsel %vm444, %v1109, %v1110
        %v1113 = vadd.f32 %v1104, %v1111
        %v1114 = vstv %s390
        %v1115 = vmul.f32 %v1114, %v462
        %1117 = vrot.lane.b32.xlu0 %v1115, 32
        %v1118 = vpop.permute.xlu0 %1117
        %v1119 = vrot.slane %v1118, 1
        %v1120 = vsel %vm454, %v1118, %v1119
        %v1122 = vadd.f32 %v1113, %v1120
        %vm1123 = vcmp.lt.s32.totalorder %v261, 14
        %1125 = vrot.lane.b32.xlu0 %v1122, 123
        %v1126 = vpop.permute.xlu0 %1125
        %v1127 = vrot.slane %v1126, 1
        %vm1128 = vcmask 1006592
        %v1129 = vsel %vm1128, %v1126, %v1127
        %v1131 = vsel %vm1123, %v1129, 0.0
        %v1132 = vadd.f32 %v1009, %v1131
        %v1133 = vstv %s300
        %v1134 = vmul.f32 %v1133, %v397
        %v1135 = vstv %s307
        %v1136 = vmul.f32 %v1135, %v397
        %1138 = vrot.lane.b32.xlu0 %v1136, 112
        %v1139 = vpop.permute.xlu0 %1138
        %v1140 = vrot.slane %v1139, 1
        %v1141 = vsel %vm404, %v1139, %v1140
        %v1143 = vadd.f32 %v1134, %v1141
        %v1144 = vstv %s314
        %v1145 = vmul.f32 %v1144, %v397
        %1147 = vrot.lane.b32.xlu0 %v1145, 96
        %v1148 = vpop.permute.xlu0 %1147
        %v1149 = vrot.slane %v1148, 1
        %v1150 = vsel %vm414, %v1148, %v1149
        %v1152 = vadd.f32 %v1143, %v1150
        %v1153 = vstv %s321
        %v1154 = vmul.f32 %v1153, %v397
        %1156 = vrot.lane.b32.xlu0 %v1154, 80
        %v1157 = vpop.permute.xlu0 %1156
        %v1158 = vrot.slane %v1157, 1
        %v1159 = vsel %vm424, %v1157, %v1158
        %v1161 = vadd.f32 %v1152, %v1159
        %v1162 = vstv %s328
        %v1163 = vmul.f32 %v1162, %v397
        %1165 = vrot.lane.b32.xlu0 %v1163, 64
        %v1166 = vpop.permute.xlu0 %1165
        %v1167 = vrot.slane %v1166, 1
        %v1168 = vsel %vm434, %v1166, %v1167
        %v1170 = vadd.f32 %v1161, %v1168
        %v1171 = vstv %s335
        %v1172 = vmul.f32 %v1171, %v397
        %1174 = vrot.lane.b32.xlu0 %v1172, 48
        %v1175 = vpop.permute.xlu0 %1174
        %v1176 = vrot.slane %v1175, 1
        %v1177 = vsel %vm444, %v1175, %v1176
        %v1179 = vadd.f32 %v1170, %v1177
        %v1180 = vstv %s342
        %v1181 = vmul.f32 %v1180, %v397
        %1183 = vrot.lane.b32.xlu0 %v1181, 32
        %v1184 = vpop.permute.xlu0 %1183
        %v1185 = vrot.slane %v1184, 1
        %v1186 = vsel %vm454, %v1184, %v1185
        %v1188 = vadd.f32 %v1179, %v1186
        %v1189 = vstv %s349
        %v1190 = vmul.f32 %v1189, %v462
        %v1191 = vadd.f32 %v1188, %v1190
        %v1192 = vstv %s356
        %v1193 = vmul.f32 %v1192, %v462
        %1195 = vrot.lane.b32.xlu0 %v1193, 112
        %v1196 = vpop.permute.xlu0 %1195
        %v1197 = vrot.slane %v1196, 1
        %v1198 = vsel %vm404, %v1196, %v1197
        %v1200 = vadd.f32 %v1191, %v1198
        %v1201 = vstv %s363
        %v1202 = vmul.f32 %v1201, %v462
        %1204 = vrot.lane.b32.xlu0 %v1202, 96
        %v1205 = vpop.permute.xlu0 %1204
        %v1206 = vrot.slane %v1205, 1
        %v1207 = vsel %vm414, %v1205, %v1206
        %v1209 = vadd.f32 %v1200, %v1207
        %v1210 = vstv %s370
        %v1211 = vmul.f32 %v1210, %v462
        %1213 = vrot.lane.b32.xlu0 %v1211, 80
        %v1214 = vpop.permute.xlu0 %1213
        %v1215 = vrot.slane %v1214, 1
        %v1216 = vsel %vm424, %v1214, %v1215
        %v1218 = vadd.f32 %v1209, %v1216
        %v1219 = vstv %s377
        %v1220 = vmul.f32 %v1219, %v462
        %1222 = vrot.lane.b32.xlu0 %v1220, 64
        %v1223 = vpop.permute.xlu0 %1222
        %v1224 = vrot.slane %v1223, 1
        %v1225 = vsel %vm434, %v1223, %v1224
        %v1227 = vadd.f32 %v1218, %v1225
        %v1228 = vstv %s384
        %v1229 = vmul.f32 %v1228, %v462
        %1231 = vrot.lane.b32.xlu0 %v1229, 48
        %v1232 = vpop.permute.xlu0 %1231
        %v1233 = vrot.slane %v1232, 1
        %v1234 = vsel %vm444, %v1232, %v1233
        %v1236 = vadd.f32 %v1227, %v1234
        %v1237 = vstv %s391
        %v1238 = vmul.f32 %v1237, %v462
        %1240 = vrot.lane.b32.xlu0 %v1238, 32
        %v1241 = vpop.permute.xlu0 %1240
        %v1242 = vrot.slane %v1241, 1
        %v1243 = vsel %vm454, %v1241, %v1242
        %v1245 = vadd.f32 %v1236, %v1243
        %vm1246 = vcmp.lt.s32.totalorder %v261, 13
        %1248 = vrot.lane.b32.xlu0 %v1245, 122
        %v1249 = vpop.permute.xlu0 %1248
        %v1250 = vrot.slane %v1249, 1
        %vm1251 = vcmask 998400
        %v1252 = vsel %vm1251, %v1249, %v1250
        %v1254 = vsel %vm1246, %v1252, 0.0
        %v1255 = vadd.f32 %v1132, %v1254
        %v1256 = vxor.u32 %v1255, 2147483648
        %v1257 = vmul.f32 %v1256, 1.442695
        %v1258 = vpow.pop %v1257
        %v1259 = vadd.f32 %v1258, 1.0
        %v1260 = vrcp.pop %v1259
        %v1261 = vmul.f32 %v1259, %v1260
        %v1262 = vsub.f32 1.0, %v1261
        %v1263 = vmul.f32 %v1260, %v1262
        %v1264 = vadd.f32 %v1260, %v1263
        %vm1265 = vweird.f32 %v1259
        %vm1266 = vweird.f32 %v1260
        %vm1267 = vmor %vm1265, %vm1266
        %v1268 = vsel %vm1267, %v1260, %v1264
        %v1269 = vand.u32 2147483647, %v1259
        %vm1270 = vcmp.eq.f32.partialorder %v1269, 8.507059e+37
        %v1271 = vand.u32 %v1259, 2147483648
        %v1272 = vor.u32 1.1754944e-38, %v1271
        %v1273 = vsel %vm1270, %v1272, %v1268
        %v1274 = vmul.f32 1.0, %v1273
        %v1275 = vld [vmem:[%s193] sm:$0xff]
        %v1277 = vperm.slane %v1274, 0
        %v1278 = vperm.slane %v1274, 1
        %v1279 = vrot.slane %v1278, 4
        %v1280 = vsel %vm225, %v1277, %v1279
        %v1282 = vmul.f32 %v1275, %v1280
        %1283 = vst [vmem:[%s217] sm:$0xff] %v1282
        %s1284 = sand.u32 %s98, 1
        %s1285 = scalar_lea.sflag [#allocation5], %s1284
        %s1286 = sand.u32 %s98, 1
        %s1287 = smul.addr %s1286, 8
        %s1288 = scalar_lea.vmem [#allocation10], %s1287
        // Predicated region
        $region45: #{tpu_custom_call.1} parent=31 // pred_check
          %p1289 = pneg %p108
        $region46: #{tpu_custom_call.1} parent=31 // pred_check_branch
          %1291 = sbr.rel (%p1289) target = $region48
        $region47: #{tpu_custom_call.1} parent=31 // pred_region
          %1293 = vsyncadd %s1285, 0
          %s1294 = smul.addr %s22, 2
          %s1295 = smul.addr %s1294, 4
          %s1296 = scalar_lea.hbm %s3, %s1295
          %s1298 = sshll.u32 %s1288, 4
          %s1299 = int_to_ptr.vmem [resolvable:$true] %s1298
          %s1300 = sshll.u32 %s1296, 4
          %s1301 = int_to_ptr.hbm [resolvable:$true] %s1300
          %1303 = dma.vmem_to_hbm [thread:$0]  %s1299, 128, %s1301, %s1285
        $region48: #{tpu_custom_call.1} parent=31 // pred_fallthru
          _
      $region32: #{tpu_custom_call.1} parent=5 // pred_fallthru
        _
      %p1304 = scmp.le.s32.totalorder 2, %s17
      // Predicated region
      $region49: #{tpu_custom_call.1} parent=5 // pred_check
        %p1305 = pneg %p1304
      $region50: #{tpu_custom_call.1} parent=5 // pred_check_branch
        %1307 = sbr.rel (%p1305) target = $region52
      $region51: #{tpu_custom_call.1} parent=5 // pred_region
        %s1308 = ssub.s32 %s17, 2
        // Predicated region
        $region53: #{tpu_custom_call.1} parent=51 // pred_check
          %p1309 = pneg %p114
        $region54: #{tpu_custom_call.1} parent=51 // pred_check_branch
          %1311 = sbr.rel (%p1309) target = $region56
        $region55: #{tpu_custom_call.1} parent=51 // pred_region
          %s1312 = sand.u32 %s99, 1
          %s1313 = scalar_lea.sflag [#allocation5], %s1312
          %s1314 = sand.u32 %s99, 1
          %s1315 = smul.addr %s1314, 8
          %s1316 = scalar_lea.vmem [#allocation10], %s1315
          %1318 = dma.done %s1313, 128
        $region56: #{tpu_custom_call.1} parent=51 // pred_fallthru
          _
      $region52: #{tpu_custom_call.1} parent=5 // pred_fallthru
        _
    $region6: #{tpu_custom_call.1} parent=1 // loop_footer
      %s21 = sadd.s32 1, %s17
    $region7: #{tpu_custom_call.1} parent=1 // loop_footer_branch
      %16 = sbr.rel target = $region3
    $region8: #{tpu_custom_call.1} parent=1 // loop_exit
      _
    %1319 = vsyncpa [#allocation4], 1
    %s1320 = scalar_lea.sflag [#allocation4], 1
    %1321 = vsyncpa %s1320, 1
    %1322 = vsyncpa [#allocation9], 1
    %s1323 = scalar_lea.sflag [#allocation9], 1
    %1324 = vsyncpa %s1323, 1
    %1325 = vsyncpa [#allocation5], 1
    %s1326 = scalar_lea.sflag [#allocation5], 1
    %1327 = vsyncpa %s1326, 1
    %1328 = vsyncpa [#allocation6], 1
    %s1329 = scalar_lea.sflag [#allocation6], 1
    %1330 = vsyncpa %s1329, 1

</llo_original>
